<compile_context>
chip_gen: v6e
topology: v6e:2x2x1
jax: 0.10.0
libtpu: 0.0.40
codegen_flags: <defaults>
</compile_context>

<pallas_src>
import numpy as np
import jax
import jax.numpy as jnp
from jax.experimental import pallas as pl
from jax.experimental.pallas import tpu as pltpu

SR = 44100
N_FFT = 2048
HOP = 2048
N_FREQ = N_FFT // 2 + 1                                   # 1025 (onesided)
FREQ_TILE = 128
NUM_FREQ_TILES = (N_FREQ + FREQ_TILE - 1) // FREQ_TILE    # 9
NF_PAD = NUM_FREQ_TILES * FREQ_TILE                       # 1152
N_BINS = 128                                              # synthetic pitch-bin head
BINS_PER_OCTAVE = 24.0
F_MIN = 55.0


# ---------------------------------------------------------------------------
# Host-precomputed constants (hoisted out of the traced function).
# trig is tile-interleaved: per freq tile j the columns are [cos_j | sin_j],
# giving one (N_FFT, 2*FREQ_TILE) RHS block per grid step.  Padded bins >= 1025
# are zeroed so no in-kernel masking is needed.
# ---------------------------------------------------------------------------
def _build_constants():
    n = np.arange(N_FFT, dtype=np.float64)[:, None]
    k = np.arange(NF_PAD, dtype=np.float64)[None, :]
    ang = 2.0 * np.pi * n * k / float(N_FFT)
    valid = (np.arange(NF_PAD) < N_FREQ)[None, :]
    cos_m = np.where(valid, np.cos(ang), 0.0)
    sin_m = np.where(valid, -np.sin(ang), 0.0)
    trig = np.zeros((N_FFT, NUM_FREQ_TILES * 2 * FREQ_TILE), dtype=np.float64)
    for j in range(NUM_FREQ_TILES):
        c0 = j * 2 * FREQ_TILE
        trig[:, c0:c0 + FREQ_TILE] = cos_m[:, j * FREQ_TILE:(j + 1) * FREQ_TILE]
        trig[:, c0 + FREQ_TILE:c0 + 2 * FREQ_TILE] = sin_m[:, j * FREQ_TILE:(j + 1) * FREQ_TILE]
    hann = 0.5 - 0.5 * np.cos(2.0 * np.pi * np.arange(N_FFT) / float(N_FFT))
    win = hann / np.sqrt(np.sum(hann * hann))             # normalized=True
    return (jnp.asarray(trig, dtype=jnp.bfloat16),        # bf16 halves HBM traffic
            jnp.asarray(win, dtype=jnp.float32))


_TRIG_BF16, _WIN_F32 = _build_constants()


# ---------------------------------------------------------------------------
# Fused kernel: windowed frames -> power spectrum tile -> (a) loudness partial
# sum, (b) pitch-head logits accumulation.  Grid = (row tiles [parallel],
# freq tiles [arbitrary / reduction]).  Outputs are resident accumulators.
# ---------------------------------------------------------------------------
def spec_pitch_kernel(frames_ref, trig_ref, w_ref, lsum_ref, logits_ref):
    j = pl.program_id(1)

    @pl.when(j == 0)
    def _():
        lsum_ref[...] = jnp.zeros_like(lsum_ref)
        logits_ref[...] = jnp.zeros_like(logits_ref)

    # single N=256 matmul: [re | im] halves are 128-lane aligned
    ri = jnp.dot(frames_ref[...], trig_ref[...],
                 preferred_element_type=jnp.float32)
    re = ri[:, :FREQ_TILE]
    im = ri[:, FREQ_TILE:]
    p = re * re + im * im                                  # power, f32 (TM, 128)

    lsum_ref[...] += p                                     # loudness partial sum
    logits_ref[...] += jnp.dot(p.astype(jnp.bfloat16), w_ref[...],
                               preferred_element_type=jnp.float32)


# ---------------------------------------------------------------------------
# Glue helpers
# ---------------------------------------------------------------------------
def _interp_linear_2x(s):
    """torch.nn.functional.interpolate(scale_factor=2, mode='linear',
    align_corners=False) along the last axis. s: (B, L) -> (B, 2L)."""
    left = jnp.concatenate([s[:, :1], s[:, :-1]], axis=-1)    # x[k-1] (clamped)
    right = jnp.concatenate([s[:, 1:], s[:, -1:]], axis=-1)   # x[k+1] (clamped)
    even = 0.25 * left + 0.75 * s
    odd = 0.75 * s + 0.25 * right
    return jnp.stack([even, odd], axis=-1).reshape(s.shape[0], -1)


# ---------------------------------------------------------------------------
# PESTO.forward
# ---------------------------------------------------------------------------
def pesto_forward(x, w_pitch, b_pitch):
    B, _, T = x.shape
    assert T % HOP == 0

    # ---- extract_loudness framing: torchaudio Spectrogram(n_fft=2048, hop=2048,
    # normalized=True, power=2, center=True, reflect pad, Hann window)
    signal = x[:, 0, :]                                       # x.squeeze(1)
    padded = jnp.pad(signal, ((0, 0), (N_FFT // 2, N_FFT // 2)), mode="reflect")
    F = T // HOP + 1
    frames = padded.reshape(B, F, N_FFT)                      # hop == n_fft
    frames_w = (frames * _WIN_F32).astype(jnp.bfloat16)

    R = B * F
    TM = min(256, ((R + 7) // 8) * 8)                         # row tile (mult of 8)
    R_pad = ((R + TM - 1) // TM) * TM
    frames_flat = jnp.pad(frames_w.reshape(R, N_FFT), ((0, R_pad - R), (0, 0)))

    w_bf16 = w_pitch.astype(jnp.bfloat16)

    lsum, logits = pl.pallas_call(
        spec_pitch_kernel,
        out_shape=(jax.ShapeDtypeStruct((R_pad, FREQ_TILE), jnp.float32),
                   jax.ShapeDtypeStruct((R_pad, N_BINS), jnp.float32)),
        grid=(R_pad // TM, NUM_FREQ_TILES),
        in_specs=[pl.BlockSpec((TM, N_FFT), lambda i, j: (i, 0)),
                  pl.BlockSpec((N_FFT, 2 * FREQ_TILE), lambda i, j: (0, j)),
                  pl.BlockSpec((FREQ_TILE, N_BINS), lambda i, j: (j, 0))],
        out_specs=(pl.BlockSpec((TM, FREQ_TILE), lambda i, j: (i, 0)),
                   pl.BlockSpec((TM, N_BINS), lambda i, j: (i, 0))),
        compiler_params=pltpu.CompilerParams(
            dimension_semantics=("parallel", "arbitrary"),
            vmem_limit_bytes=32 * 1024 * 1024),
    )(frames_flat, _TRIG_BF16, w_bf16)

    # ---- loudness: mean power over freq, drop last frame, 2x interp, normalize
    loud_frames = jnp.sum(lsum[:R], axis=-1).reshape(B, F) / float(N_FREQ)
    loud = loud_frames[:, :-1]                                # [..., :-1]
    loud = _interp_linear_2x(loud)                            # scale_factor=2
    loud = loud[:, None, :]                                   # unsqueeze(1)
    loud_max = jnp.max(loud, axis=-1)[:, 0]                   # (B,)
    loud = loud / (loud_max[:, None, None] + 1e-6)

    # ---- pitch / confidence (synthetic stand-in for pesto._predict)
    # TODO(synk): pretrained PESTO ('mir-1k') weights and its CQT/conv stack are
    # not reproducible here; a deterministic spectral pitch head is used instead.
    logit_full = logits[:R] + b_pitch                         # (R, N_BINS)
    probs = jax.nn.softmax(logit_full, axis=-1)
    conf = jnp.max(probs, axis=-1).reshape(B, F)
    bin_idx = jnp.argmax(probs, axis=-1).astype(jnp.float32).reshape(B, F)
    pitch = F_MIN * jnp.exp2(bin_idx / BINS_PER_OCTAVE)

    pitch = pitch / 800.0
    pitch = jnp.where(conf < 0.2, 0.0, pitch)                 # pitch[conf<0.2]=0
    pitch = jnp.nan_to_num(pitch, nan=0.0, posinf=0.0, neginf=0.0)

    # TODO(synk): pesto's own hop / `x.repeat` / tail-slice alignment is replaced by
    # aligning pitch to the STFT frame grid (drop last frame, repeat 2x to match loudness).
    pitch = jnp.repeat(pitch[:, :-1], 2, axis=-1).reshape(B, 1, -1)

    out = jnp.concatenate([pitch, loud], axis=1)              # (B, 2, L)
    return out


if __name__ == "__main__":
    key = jax.random.PRNGKey(0)
    kx, kw = jax.random.split(key, 2)

    B, T = 2, 8 * HOP                                         # x: (2, 1, 16384)
    x = jax.random.normal(kx, (B, 1, T), dtype=jnp.float32)

    # deterministic synthetic pitch-head parameters
    w_pitch = (0.05 * jax.random.normal(kw, (NF_PAD, N_BINS))).astype(jnp.float32)
    b_pitch = jnp.zeros((1, N_BINS), dtype=jnp.float32)

    out = jax.jit(pesto_forward)(x, w_pitch, b_pitch)
    out = jax.block_until_ready(out)

    L = 2 * (T // HOP)
    assert out.shape == (B, 2, L), out.shape
    assert out.dtype == jnp.float32
    assert bool(jnp.all(jnp.isfinite(out)))
    print("KERNEL_OK")
</pallas_src>

<mosaic_0001>
module attributes {stable_mosaic.version = 11 : i64} {
  func.func @spec_pitch_kernel(%arg0: i32, %arg1: i32, %arg2: memref<24x2048xbf16, #tpu.memory_space<vmem>>, %arg3: memref<2048x256xbf16, #tpu.memory_space<vmem>>, %arg4: memref<128x128xbf16, #tpu.memory_space<vmem>>, %arg5: memref<24x128xf32, #tpu.memory_space<vmem>>, %arg6: memref<24x128xf32, #tpu.memory_space<vmem>>) attributes {dimension_semantics = [#tpu.dimension_semantics<parallel>, #tpu.dimension_semantics<arbitrary>], iteration_bounds = array<i64: 1, 9>, scalar_prefetch = 0 : i64, scratch_operands = 0 : i64, tpu.core_type = #tpu.core_type<tc>, window_params = [{transform_indices = @transform_0, window_bounds = array<i64: 24, 2048>}, {transform_indices = @transform_1, window_bounds = array<i64: 2048, 256>}, {transform_indices = @transform_2, window_bounds = array<i64: 128, 128>}, {transform_indices = @transform_3, window_bounds = array<i64: 24, 128>}, {transform_indices = @transform_4, window_bounds = array<i64: 24, 128>}]} {
    %c0_i32 = arith.constant 0 : i32
    %0 = arith.cmpi eq, %arg1, %c0_i32 : i32
    %1 = arith.extui %0 : i1 to i32
    %c0_i32_0 = arith.constant 0 : i32
    %2 = arith.cmpi ne, %1, %c0_i32_0 : i32
    scf.if %2 {
      %cst_15 = arith.constant 0.000000e+00 : f32
      %20 = vector.broadcast %cst_15 : f32 to vector<24x128xf32>
      %c0_16 = arith.constant 0 : index
      %c0_17 = arith.constant 0 : index
      %21 = vector.load %arg5[%c0_16, %c0_17] : memref<24x128xf32, #tpu.memory_space<vmem>>, vector<24x128xf32>
      tpu.vector_store %arg5[%c0_16, %c0_17], %20 {strides = array<i32>} : memref<24x128xf32, #tpu.memory_space<vmem>>, vector<24x128xf32>,
      %cst_18 = arith.constant 0.000000e+00 : f32
      %22 = vector.broadcast %cst_18 : f32 to vector<24x128xf32>
      %c0_19 = arith.constant 0 : index
      %c0_20 = arith.constant 0 : index
      %23 = vector.load %arg6[%c0_19, %c0_20] : memref<24x128xf32, #tpu.memory_space<vmem>>, vector<24x128xf32>
      tpu.vector_store %arg6[%c0_19, %c0_20], %22 {strides = array<i32>} : memref<24x128xf32, #tpu.memory_space<vmem>>, vector<24x128xf32>,
    } else {
    }
    %c0 = arith.constant 0 : index
    %c0_1 = arith.constant 0 : index
    %3 = vector.load %arg2[%c0, %c0_1] : memref<24x2048xbf16, #tpu.memory_space<vmem>>, vector<24x2048xbf16>
    %c0_2 = arith.constant 0 : index
    %c0_3 = arith.constant 0 : index
    %4 = vector.load %arg3[%c0_2, %c0_3] : memref<2048x256xbf16, #tpu.memory_space<vmem>>, vector<2048x256xbf16>
    %cst = arith.constant dense<0.000000e+00> : vector<24x256xf32>
    %5 = tpu.matmul %3, %4, %cst {dimension_numbers = #tpu.dot_dimension_numbers<[1], [0], [0], [1], [0, 0, 1, 1], [], []>} : vector<24x2048xbf16>, vector<2048x256xbf16>, vector<24x256xf32> -> vector<24x256xf32>
    %6 = vector.extract_strided_slice %5 {offsets = [0, 0], sizes = [24, 128], strides = [1, 1]} : vector<24x256xf32> to vector<24x128xf32>
    %7 = vector.extract_strided_slice %5 {offsets = [0, 128], sizes = [24, 128], strides = [1, 1]} : vector<24x256xf32> to vector<24x128xf32>
    %8 = arith.mulf %6, %6 : vector<24x128xf32>
    %9 = arith.mulf %7, %7 : vector<24x128xf32>
    %10 = arith.addf %8, %9 : vector<24x128xf32>
    %c0_4 = arith.constant 0 : index
    %c0_5 = arith.constant 0 : index
    %11 = vector.load %arg5[%c0_4, %c0_5] : memref<24x128xf32, #tpu.memory_space<vmem>>, vector<24x128xf32>
    %12 = arith.addf %11, %10 : vector<24x128xf32>
    %c0_6 = arith.constant 0 : index
    %c0_7 = arith.constant 0 : index
    %13 = vector.load %arg5[%c0_6, %c0_7] : memref<24x128xf32, #tpu.memory_space<vmem>>, vector<24x128xf32>
    tpu.vector_store %arg5[%c0_6, %c0_7], %12 {strides = array<i32>} : memref<24x128xf32, #tpu.memory_space<vmem>>, vector<24x128xf32>,
    %c0_8 = arith.constant 0 : index
    %c0_9 = arith.constant 0 : index
    %14 = vector.load %arg6[%c0_8, %c0_9] : memref<24x128xf32, #tpu.memory_space<vmem>>, vector<24x128xf32>
    %15 = arith.truncf %10 : vector<24x128xf32> to vector<24x128xbf16>
    %c0_10 = arith.constant 0 : index
    %c0_11 = arith.constant 0 : index
    %16 = vector.load %arg4[%c0_10, %c0_11] : memref<128x128xbf16, #tpu.memory_space<vmem>>, vector<128x128xbf16>
    %cst_12 = arith.constant dense<0.000000e+00> : vector<24x128xf32>
    %17 = tpu.matmul %15, %16, %cst_12 {dimension_numbers = #tpu.dot_dimension_numbers<[1], [0], [0], [1], [0, 0, 1, 1], [], []>} : vector<24x128xbf16>, vector<128x128xbf16>, vector<24x128xf32> -> vector<24x128xf32>
    %18 = arith.addf %14, %17 : vector<24x128xf32>
    %c0_13 = arith.constant 0 : index
    %c0_14 = arith.constant 0 : index
    %19 = vector.load %arg6[%c0_13, %c0_14] : memref<24x128xf32, #tpu.memory_space<vmem>>, vector<24x128xf32>
    tpu.vector_store %arg6[%c0_13, %c0_14], %18 {strides = array<i32>} : memref<24x128xf32, #tpu.memory_space<vmem>>, vector<24x128xf32>,
    return
  }
  func.func @transform_0(%arg0: i32, %arg1: i32) -> (i32, i32) {
    %c0_i32 = arith.constant 0 : i32
    %c0_i32_0 = arith.constant 0 : i32
    return %arg0, %c0_i32 : i32, i32
  }
  func.func @transform_1(%arg0: i32, %arg1: i32) -> (i32, i32) {
    %c0_i32 = arith.constant 0 : i32
    %c0_i32_0 = arith.constant 0 : i32
    return %c0_i32, %arg1 : i32, i32
  }
  func.func @transform_2(%arg0: i32, %arg1: i32) -> (i32, i32) {
    %c0_i32 = arith.constant 0 : i32
    %c0_i32_0 = arith.constant 0 : i32
    return %arg1, %c0_i32 : i32, i32
  }
  func.func @transform_3(%arg0: i32, %arg1: i32) -> (i32, i32) {
    %c0_i32 = arith.constant 0 : i32
    %c0_i32_0 = arith.constant 0 : i32
    return %arg0, %c0_i32 : i32, i32
  }
  func.func @transform_4(%arg0: i32, %arg1: i32) -> (i32, i32) {
    %c0_i32 = arith.constant 0 : i32
    %c0_i32_0 = arith.constant 0 : i32
    return %arg0, %c0_i32 : i32, i32
  }
}

</mosaic_0001>

<llo_original>
// kernel: pesto_forward.1
$region0: #{pesto_forward.1}
  #allocation0 [shape = 'u32[]', space=smem, size = 0x4, offset = 0x4, fixed_abs, tag = 'smem constant byte address 0x4 - core index']
  #allocation1 [shape = 'u32[144,128]{1,0:T(1,128)}', space=vmem, size = 0x12000, scoped, tag = 'internal scratch']
  %s0 = inlined_call_operand.vmem [shape: bf16[24,2048], index: 0, kind: input, shape index: {}]
  %s1 = inlined_call_operand.hbm [shape: bf16[2048,2304], index: 1, kind: input, shape index: {}]
  %s2 = inlined_call_operand.vmem [shape: bf16[1152,128], index: 2, kind: input, shape index: {}]
  %s3 = inlined_call_operand.vmem [shape: f32[24,128], index: 3, kind: output, shape index: {0}]
  %s4 = inlined_call_operand.vmem [shape: f32[24,128], index: 4, kind: output, shape index: {1}]
  %5 = xla_tuple %s3, %s4
  %s6 = sld [smem:[#allocation0]]
  $region61: #{pesto_forward.1} parent=0
    _
  %s8 = ssub.s32 1, %s6
  %s9 = scalar_select 0, %s8, %s6
  $region1: #{pesto_forward.1} parent=0
    #allocation2 [shape = 'u8[2097152]{0}', space=vmem, size = 0x200000, scoped, tag = 'input window, operand 1']
    #allocation3 [shape = 's32[2]{0}', space=sflag, size = 0x8, scoped, tag = 'scoped memory for pesto_forward.1']
    %10 = vsyncpa [#allocation3], 0
    %s11 = scalar_lea.sflag [#allocation3], 1
    %12 = vsyncpa %s11, 0
    loop: start=0, step=1, limit=11
    $region2: #{pesto_forward.1} parent=1 // loop_pre_header
      _
    $region3: #{pesto_forward.1} parent=1 // loop_header
      %s14 = sphi 0, %s18
      %p15 = scmp.ge.s32.totalorder %s14, 11
      %s21 = sphi 0, %s33
      %s22 = sphi 0, %s29
      %s23 = sphi 0, %s21
      %s24 = sphi 0, %s22
      %s25 = sphi 0, %s23
      %s26 = sphi 0, %s24
      %s36 = sphi 0, %s38
      %s39 = sphi 0, %s36
      %s40 = sphi 0, %s39
      %s56 = sphi 0, %s40
      %s62 = sphi 0, %s64
      %s65 = sphi 0, %s62
      %s66 = sphi 0, %s65
      %s82 = sphi 0, %s66
      %s88 = sphi 0, %s90
      %s91 = sphi 0, %s88
      %s92 = sphi 0, %s91
      %s108 = sphi 0, %s92
      %s114 = sphi 0, %s116
      %s117 = sphi 0, %s114
      %s118 = sphi 0, %s117
      %s134 = sphi 0, %s118
      %s140 = sphi 0, %s142
      %s143 = sphi 0, %s140
      %s144 = sphi 0, %s143
      %s160 = sphi 0, %s144
    $region4: #{pesto_forward.1} parent=1 // loop_header_branch
      %17 = sbr.rel (%p15) target = $region8
    $region5: #{pesto_forward.1} parent=1 // loop_body
      %s19 = ssub.s32 %s14, 1
      %s20 = ssub.s32 %s14, 2
      %s27 = sadd.s32 1, %s22
      %p28 = scmp.ge.s32.totalorder %s27, 9
      %s29 = scalar_select %p28, 0, %s27
      %s30 = sadd.s32 1, %s21
      %s31 = scalar_select %p28, %s30, %s21
      %p32 = scmp.ge.s32.totalorder %s31, 1
      %s33 = scalar_select %p32, 0, %s31
      %s34 = ssub.s32 %s21, %s33
      %p35 = scmp.eq.s32.totalorder %s34, 0
      %s37 = sadd.s32 %s36, 1
      %s38 = scalar_select %p35, %s36, %s37
      %p41 = pneg %p35
      %p42 = scmp.eq.s32.totalorder %s14, 8
      %p43 = por %p41, %p42
      %p44 = scmp.ne.s32.totalorder %s36, %s39
      %p45 = scmp.eq.s32.totalorder %s14, 0
      %p46 = por %p44, %p45
      %p47 = scmp.ne.s32.totalorder %s36, %s39
      %p48 = scmp.eq.s32.totalorder %s19, 8
      %p49 = por %p47, %p48
      %p50 = scmp.ne.s32.totalorder %s39, %s40
      %p51 = scmp.eq.s32.totalorder %s19, 0
      %p52 = por %p50, %p51
      %p53 = scmp.ne.s32.totalorder %s39, %s40
      %p54 = scmp.eq.s32.totalorder %s20, 8
      %p55 = por %p53, %p54
      %p57 = scmp.ne.s32.totalorder %s40, %s56
      %p58 = scmp.eq.s32.totalorder %s20, 0
      %p59 = por %p57, %p58
      %s60 = ssub.s32 %s22, %s29
      %p61 = scmp.eq.s32.totalorder %s60, 0
      %s63 = sadd.s32 %s62, 1
      %s64 = scalar_select %p61, %s62, %s63
      %p67 = pneg %p61
      %p68 = scmp.eq.s32.totalorder %s14, 8
      %p69 = por %p67, %p68
      %p70 = scmp.ne.s32.totalorder %s62, %s65
      %p71 = scmp.eq.s32.totalorder %s14, 0
      %p72 = por %p70, %p71
      %p73 = scmp.ne.s32.totalorder %s62, %s65
      %p74 = scmp.eq.s32.totalorder %s19, 8
      %p75 = por %p73, %p74
      %p76 = scmp.ne.s32.totalorder %s65, %s66
      %p77 = scmp.eq.s32.totalorder %s19, 0
      %p78 = por %p76, %p77
      %p79 = scmp.ne.s32.totalorder %s65, %s66
      %p80 = scmp.eq.s32.totalorder %s20, 8
      %p81 = por %p79, %p80
      %p83 = scmp.ne.s32.totalorder %s66, %s82
      %p84 = scmp.eq.s32.totalorder %s20, 0
      %p85 = por %p83, %p84
      %s86 = ssub.s32 %s22, %s29
      %p87 = scmp.eq.s32.totalorder %s86, 0
      %s89 = sadd.s32 %s88, 1
      %s90 = scalar_select %p87, %s88, %s89
      %p93 = pneg %p87
      %p94 = scmp.eq.s32.totalorder %s14, 8
      %p95 = por %p93, %p94
      %p96 = scmp.ne.s32.totalorder %s88, %s91
      %p97 = scmp.eq.s32.totalorder %s14, 0
      %p98 = por %p96, %p97
      %p99 = scmp.ne.s32.totalorder %s88, %s91
      %p100 = scmp.eq.s32.totalorder %s19, 8
      %p101 = por %p99, %p100
      %p102 = scmp.ne.s32.totalorder %s91, %s92
      %p103 = scmp.eq.s32.totalorder %s19, 0
      %p104 = por %p102, %p103
      %p105 = scmp.ne.s32.totalorder %s91, %s92
      %p106 = scmp.eq.s32.totalorder %s20, 8
      %p107 = por %p105, %p106
      %p109 = scmp.ne.s32.totalorder %s92, %s108
      %p110 = scmp.eq.s32.totalorder %s20, 0
      %p111 = por %p109, %p110
      %s112 = ssub.s32 %s21, %s33
      %p113 = scmp.eq.s32.totalorder %s112, 0
      %s115 = sadd.s32 %s114, 1
      %s116 = scalar_select %p113, %s114, %s115
      %p119 = pneg %p113
      %p120 = scmp.eq.s32.totalorder %s14, 8
      %p121 = por %p119, %p120
      %p122 = scmp.ne.s32.totalorder %s114, %s117
      %p123 = scmp.eq.s32.totalorder %s14, 0
      %p124 = por %p122, %p123
      %p125 = scmp.ne.s32.totalorder %s114, %s117
      %p126 = scmp.eq.s32.totalorder %s19, 8
      %p127 = por %p125, %p126
      %p128 = scmp.ne.s32.totalorder %s117, %s118
      %p129 = scmp.eq.s32.totalorder %s19, 0
      %p130 = por %p128, %p129
      %p131 = scmp.ne.s32.totalorder %s117, %s118
      %p132 = scmp.eq.s32.totalorder %s20, 8
      %p133 = por %p131, %p132
      %p135 = scmp.ne.s32.totalorder %s118, %s134
      %p136 = scmp.eq.s32.totalorder %s20, 0
      %p137 = por %p135, %p136
      %s138 = ssub.s32 %s21, %s33
      %p139 = scmp.eq.s32.totalorder %s138, 0
      %s141 = sadd.s32 %s140, 1
      %s142 = scalar_select %p139, %s140, %s141
      %p145 = pneg %p139
      %p146 = scmp.eq.s32.totalorder %s14, 8
      %p147 = por %p145, %p146
      %p148 = scmp.ne.s32.totalorder %s140, %s143
      %p149 = scmp.eq.s32.totalorder %s14, 0
      %p150 = por %p148, %p149
      %p151 = scmp.ne.s32.totalorder %s140, %s143
      %p152 = scmp.eq.s32.totalorder %s19, 8
      %p153 = por %p151, %p152
      %p154 = scmp.ne.s32.totalorder %s143, %s144
      %p155 = scmp.eq.s32.totalorder %s19, 0
      %p156 = por %p154, %p155
      %p157 = scmp.ne.s32.totalorder %s143, %s144
      %p158 = scmp.eq.s32.totalorder %s20, 8
      %p159 = por %p157, %p158
      %p161 = scmp.ne.s32.totalorder %s144, %s160
      %p162 = scmp.eq.s32.totalorder %s20, 0
      %p163 = por %p161, %p162
      %p164 = scmp.le.s32.totalorder 1, %s14
      %p165 = scmp.lt.s32.totalorder %s14, 10
      %p166 = pnand %p164, %p165
      %p167 = pneg %p166
      // Predicated region
      $region9: #{pesto_forward.1} parent=5 // pred_check
        _
      $region10: #{pesto_forward.1} parent=5 // pred_check_branch
        %169 = sbr.rel (%p166) target = $region12
      $region11: #{pesto_forward.1} parent=5 // pred_region
        %s170 = ssub.s32 %s14, 1
        // Predicated region
        $region13: #{pesto_forward.1} parent=11 // pred_check
          %p171 = pneg %p52
        $region14: #{pesto_forward.1} parent=11 // pred_check_branch
          %173 = sbr.rel (%p171) target = $region16
        $region15: #{pesto_forward.1} parent=11 // pred_region
          %s174 = smul.u32 3, %s23
          %p175 = scmp.lt.s32.totalorder %s174, 2
          %s176 = scalar_select %p175, %s174, 2
          %s177 = smul.addr %s176, 16
          %s178 = smul.addr %s177, 4
          %s179 = scalar_lea.vmem %s0, %s178
          %s180 = smul.u32 3, %s23
        $region16: #{pesto_forward.1} parent=11 // pred_fallthru
          _
      $region12: #{pesto_forward.1} parent=5 // pred_fallthru
        _
      %p181 = scmp.lt.s32.totalorder %s14, 9
      // Predicated region
      $region17: #{pesto_forward.1} parent=5 // pred_check
        %p182 = pneg %p181
      $region18: #{pesto_forward.1} parent=5 // pred_check_branch
        %184 = sbr.rel (%p182) target = $region20
      $region19: #{pesto_forward.1} parent=5 // pred_region
        // Predicated region
        $region21: #{pesto_forward.1} parent=19 // pred_check
          %p185 = pneg %p72
        $region22: #{pesto_forward.1} parent=19 // pred_check_branch
          %187 = sbr.rel (%p185) target = $region24
        $region23: #{pesto_forward.1} parent=19 // pred_region
          %s188 = sand.u32 %s62, 1
          %s189 = scalar_lea.sflag [#allocation3], %s188
          %s190 = sand.u32 %s62, 1
          %s191 = smul.addr %s190, 2048
          %s192 = scalar_lea.vmem [#allocation2], %s191
          %s193 = smul.u32 2, %s22
          %s195 = ssub.s32 32768, 32768
          %196 = vsyncadd %s189, %s195
          %s197 = smul.addr %s193, 64
          %s198 = scalar_lea.hbm %s1, %s197
          %s199 = sshll.u32 %s192, 4
          %s200 = int_to_ptr.vmem [resolvable:$true] %s199
          %205 = dma.hbm_to_vmem [thread:$0]  %s198, 32768, %s200, %s189, 1152, 128, 8
        $region24: #{pesto_forward.1} parent=19 // pred_fallthru
          _
        // Predicated region
        $region25: #{pesto_forward.1} parent=19 // pred_check
          %p206 = pneg %p98
        $region26: #{pesto_forward.1} parent=19 // pred_check_branch
          %208 = sbr.rel (%p206) target = $region28
        $region27: #{pesto_forward.1} parent=19 // pred_region
          %s209 = smul.u32 16, %s22
          %p210 = scmp.lt.s32.totalorder %s209, 143
          %s211 = scalar_select %p210, %s209, 143
          %s212 = smul.addr %s211, 4
          %s213 = scalar_lea.vmem %s2, %s212
          %s214 = smul.u32 16, %s22
        $region28: #{pesto_forward.1} parent=19 // pred_fallthru
          _
      $region20: #{pesto_forward.1} parent=5 // pred_fallthru
        _
      %p215 = scmp.le.s32.totalorder 1, %s14
      %p216 = scmp.lt.s32.totalorder %s14, 10
      %p217 = pnand %p215, %p216
      %p218 = pneg %p217
      // Predicated region
      $region29: #{pesto_forward.1} parent=5 // pred_check
        _
      $region30: #{pesto_forward.1} parent=5 // pred_check_branch
        %220 = sbr.rel (%p217) target = $region32
      $region31: #{pesto_forward.1} parent=5 // pred_region
        %s221 = ssub.s32 %s14, 1
        %s222 = sand.u32 %s65, 1
        %s223 = scalar_lea.sflag [#allocation3], %s222
        %s224 = sand.u32 %s65, 1
        %s225 = smul.addr %s224, 2048
        %s226 = scalar_lea.vmem [#allocation2], %s225
        // Predicated region
        $region33: #{pesto_forward.1} parent=31 // pred_check
          %p227 = pneg %p78
        $region34: #{pesto_forward.1} parent=31 // pred_check_branch
          %229 = sbr.rel (%p227) target = $region36
        $region35: #{pesto_forward.1} parent=31 // pred_region
          %230 = dma.done %s223, 32768
        $region36: #{pesto_forward.1} parent=31 // pred_fallthru
          _
        %s231 = smul.u32 3, %s23
        %p232 = scmp.lt.s32.totalorder %s231, 2
        %s233 = scalar_select %p232, %s231, 2
        %s234 = smul.addr %s233, 16
        %s235 = smul.addr %s234, 4
        %s236 = scalar_lea.vmem %s0, %s235
        %p237 = pneg %p52
        %p238 = pneg %p49
        %s239 = sand.u32 %s65, 1
        %s240 = scalar_lea.sflag [#allocation3], %s239
        %s241 = sand.u32 %s65, 1
        %s242 = smul.addr %s241, 2048
        %s243 = scalar_lea.vmem [#allocation2], %s242
        %p244 = pneg %p78
        %p245 = pneg %p75
        %s246 = smul.u32 16, %s24
        %p247 = scmp.lt.s32.totalorder %s246, 143
        %s248 = scalar_select %p247, %s246, 143
        %s249 = smul.addr %s248, 4
        %s250 = scalar_lea.vmem %s2, %s249
        %p251 = pneg %p104
        %p252 = pneg %p101
        %p253 = pneg %p130
        %p254 = pneg %p127
        %s255 = smul.u32 3, %s23
        %p256 = scmp.lt.s32.totalorder %s255, 2
        %s257 = scalar_select %p256, %s255, 2
        %s258 = smul.addr %s257, 8
        %s259 = scalar_lea.vmem %s3, %s258
        %p260 = pneg %p156
        %p261 = pneg %p153
        %s262 = smul.u32 3, %s23
        %p263 = scmp.lt.s32.totalorder %s262, 2
        %s264 = scalar_select %p263, %s262, 2
        %s265 = smul.addr %s264, 8
        %s266 = scalar_lea.vmem %s4, %s265
        %s267 = smul.u32 3, %s23
        %p268 = scmp.lt.s32.totalorder %s267, 2
        %s269 = scalar_select %p268, %s267, 2
        %s270 = smul.addr %s269, 16
        %s271 = smul.addr %s270, 4
        %s272 = scalar_lea.vmem %s0, %s271
        %s273 = smul.u32 3, %s23
        %s274 = smul.u32 2, %s24
        %s275 = smul.u32 16, %s24
        %p276 = scmp.lt.s32.totalorder %s275, 143
        %s277 = scalar_select %p276, %s275, 143
        %s278 = smul.addr %s277, 4
        %s279 = scalar_lea.vmem %s2, %s278
        %s280 = smul.u32 16, %s24
        %s281 = smul.u32 3, %s23
        %p282 = scmp.lt.s32.totalorder %s281, 2
        %s283 = scalar_select %p282, %s281, 2
        %s284 = smul.addr %s283, 8
        %s285 = scalar_lea.vmem %s3, %s284
        %s286 = smul.u32 3, %s23
        %s287 = smul.u32 3, %s23
        %p288 = scmp.lt.s32.totalorder %s287, 2
        %s289 = scalar_select %p288, %s287, 2
        %s290 = smul.addr %s289, 8
        %s291 = scalar_lea.vmem %s4, %s290
        %s292 = smul.u32 3, %s23
        %p294 = scmp.eq.s32.totalorder %s24, 0
        // Predicated region
        $region37: #{pesto_forward.1} parent=31 // pred_check
          %p295 = pneg %p294
        $region38: #{pesto_forward.1} parent=31 // pred_check_branch
          %297 = sbr.rel (%p295) target = $region40
        $region39: #{pesto_forward.1} parent=31 // pred_region
          %298 = vst [vmem:[%s285] sm:$0xff] 0.0
          %299 = vst [vmem:[%s285 + $0x8] sm:$0xff] 0.0
          %300 = vst [vmem:[%s285 + $0x10] sm:$0xff] 0.0
          %301 = vst [vmem:[%s291] sm:$0xff] 0.0
          %302 = vst [vmem:[%s291 + $0x8] sm:$0xff] 0.0
          %303 = vst [vmem:[%s291 + $0x10] sm:$0xff] 0.0
        $region40: #{pesto_forward.1} parent=31 // pred_fallthru
          _
        %v304 = vld [vmem:[%s272] sm:$0xff]
        %v305 = vld [vmem:[%s272 + $0x8] sm:$0xff]
        %v306 = vld [vmem:[%s272 + $0x10] sm:$0xff]
        %v307 = vld [vmem:[%s272 + $0x18] sm:$0xff]
        %v308 = vld [vmem:[%s272 + $0x20] sm:$0xff]
        %v309 = vld [vmem:[%s272 + $0x28] sm:$0xff]
        %v310 = vld [vmem:[%s272 + $0x30] sm:$0xff]
        %v311 = vld [vmem:[%s272 + $0x38] sm:$0xff]
        %v312 = vld [vmem:[%s272 + $0x40] sm:$0xff]
        %v313 = vld [vmem:[%s272 + $0x48] sm:$0xff]
        %v314 = vld [vmem:[%s272 + $0x50] sm:$0xff]
        %v315 = vld [vmem:[%s272 + $0x58] sm:$0xff]
        %v316 = vld [vmem:[%s272 + $0x60] sm:$0xff]
        %v317 = vld [vmem:[%s272 + $0x68] sm:$0xff]
        %v318 = vld [vmem:[%s272 + $0x70] sm:$0xff]
        %v319 = vld [vmem:[%s272 + $0x78] sm:$0xff]
        %v320 = vld [vmem:[%s272 + $0x80] sm:$0xff]
        %v321 = vld [vmem:[%s272 + $0x88] sm:$0xff]
        %v322 = vld [vmem:[%s272 + $0x90] sm:$0xff]
        %v323 = vld [vmem:[%s272 + $0x98] sm:$0xff]
        %v324 = vld [vmem:[%s272 + $0xa0] sm:$0xff]
        %v325 = vld [vmem:[%s272 + $0xa8] sm:$0xff]
        %v326 = vld [vmem:[%s272 + $0xb0] sm:$0xff]
        %v327 = vld [vmem:[%s272 + $0xb8] sm:$0xff]
        %v328 = vld [vmem:[%s226] sm:$0xff]
        %v329 = vld [vmem:[%s226 + $0x8] sm:$0xff]
        %v330 = vld [vmem:[%s226 + $0x10] sm:$0xff]
        %v331 = vld [vmem:[%s226 + $0x18] sm:$0xff]
        %v332 = vld [vmem:[%s226 + $0x20] sm:$0xff]
        %v333 = vld [vmem:[%s226 + $0x28] sm:$0xff]
        %v334 = vld [vmem:[%s226 + $0x30] sm:$0xff]
        %v335 = vld [vmem:[%s226 + $0x38] sm:$0xff]
        %v336 = vld [vmem:[%s226 + $0x40] sm:$0xff]
        %v337 = vld [vmem:[%s226 + $0x48] sm:$0xff]
        %v338 = vld [vmem:[%s226 + $0x50] sm:$0xff]
        %v339 = vld [vmem:[%s226 + $0x58] sm:$0xff]
        %v340 = vld [vmem:[%s226 + $0x60] sm:$0xff]
        %v341 = vld [vmem:[%s226 + $0x68] sm:$0xff]
        %v342 = vld [vmem:[%s226 + $0x70] sm:$0xff]
        %v343 = vld [vmem:[%s226 + $0x78] sm:$0xff]
        %v344 = vld [vmem:[%s226 + $0x80] sm:$0xff]
        %v345 = vld [vmem:[%s226 + $0x88] sm:$0xff]
        %v346 = vld [vmem:[%s226 + $0x90] sm:$0xff]
        %v347 = vld [vmem:[%s226 + $0x98] sm:$0xff]
        %v348 = vld [vmem:[%s226 + $0xa0] sm:$0xff]
        %v349 = vld [vmem:[%s226 + $0xa8] sm:$0xff]
        %v350 = vld [vmem:[%s226 + $0xb0] sm:$0xff]
        %v351 = vld [vmem:[%s226 + $0xb8] sm:$0xff]
        %v352 = vld [vmem:[%s226 + $0xc0] sm:$0xff]
        %v353 = vld [vmem:[%s226 + $0xc8] sm:$0xff]
        %v354 = vld [vmem:[%s226 + $0xd0] sm:$0xff]
        %v355 = vld [vmem:[%s226 + $0xd8] sm:$0xff]
        %v356 = vld [vmem:[%s226 + $0xe0] sm:$0xff]
        %v357 = vld [vmem:[%s226 + $0xe8] sm:$0xff]
        %v358 = vld [vmem:[%s226 + $0xf0] sm:$0xff]
        %v359 = vld [vmem:[%s226 + $0xf8] sm:$0xff]
        %v360 = vld [vmem:[%s226 + $0x100] sm:$0xff]
        %v361 = vld [vmem:[%s226 + $0x108] sm:$0xff]
        %v362 = vld [vmem:[%s226 + $0x110] sm:$0xff]
        %v363 = vld [vmem:[%s226 + $0x118] sm:$0xff]
        %v364 = vld [vmem:[%s226 + $0x120] sm:$0xff]
        %v365 = vld [vmem:[%s226 + $0x128] sm:$0xff]
        %v366 = vld [vmem:[%s226 + $0x130] sm:$0xff]
        %v367 = vld [vmem:[%s226 + $0x138] sm:$0xff]
        %v368 = vld [vmem:[%s226 + $0x140] sm:$0xff]
        %v369 = vld [vmem:[%s226 + $0x148] sm:$0xff]
        %v370 = vld [vmem:[%s226 + $0x150] sm:$0xff]
        %v371 = vld [vmem:[%s226 + $0x158] sm:$0xff]
        %v372 = vld [vmem:[%s226 + $0x160] sm:$0xff]
        %v373 = vld [vmem:[%s226 + $0x168] sm:$0xff]
        %v374 = vld [vmem:[%s226 + $0x170] sm:$0xff]
        %v375 = vld [vmem:[%s226 + $0x178] sm:$0xff]
        %v376 = vld [vmem:[%s226 + $0x180] sm:$0xff]
        %v377 = vld [vmem:[%s226 + $0x188] sm:$0xff]
        %v378 = vld [vmem:[%s226 + $0x190] sm:$0xff]
        %v379 = vld [vmem:[%s226 + $0x198] sm:$0xff]
        %v380 = vld [vmem:[%s226 + $0x1a0] sm:$0xff]
        %v381 = vld [vmem:[%s226 + $0x1a8] sm:$0xff]
        %v382 = vld [vmem:[%s226 + $0x1b0] sm:$0xff]
        %v383 = vld [vmem:[%s226 + $0x1b8] sm:$0xff]
        %v384 = vld [vmem:[%s226 + $0x1c0] sm:$0xff]
        %v385 = vld [vmem:[%s226 + $0x1c8] sm:$0xff]
        %v386 = vld [vmem:[%s226 + $0x1d0] sm:$0xff]
        %v387 = vld [vmem:[%s226 + $0x1d8] sm:$0xff]
        %v388 = vld [vmem:[%s226 + $0x1e0] sm:$0xff]
        %v389 = vld [vmem:[%s226 + $0x1e8] sm:$0xff]
        %v390 = vld [vmem:[%s226 + $0x1f0] sm:$0xff]
        %v391 = vld [vmem:[%s226 + $0x1f8] sm:$0xff]
        %v392 = vld [vmem:[%s226 + $0x200] sm:$0xff]
        %v393 = vld [vmem:[%s226 + $0x208] sm:$0xff]
        %v394 = vld [vmem:[%s226 + $0x210] sm:$0xff]
        %v395 = vld [vmem:[%s226 + $0x218] sm:$0xff]
        %v396 = vld [vmem:[%s226 + $0x220] sm:$0xff]
        %v397 = vld [vmem:[%s226 + $0x228] sm:$0xff]
        %v398 = vld [vmem:[%s226 + $0x230] sm:$0xff]
        %v399 = vld [vmem:[%s226 + $0x238] sm:$0xff]
        %v400 = vld [vmem:[%s226 + $0x240] sm:$0xff]
        %v401 = vld [vmem:[%s226 + $0x248] sm:$0xff]
        %v402 = vld [vmem:[%s226 + $0x250] sm:$0xff]
        %v403 = vld [vmem:[%s226 + $0x258] sm:$0xff]
        %v404 = vld [vmem:[%s226 + $0x260] sm:$0xff]
        %v405 = vld [vmem:[%s226 + $0x268] sm:$0xff]
        %v406 = vld [vmem:[%s226 + $0x270] sm:$0xff]
        %v407 = vld [vmem:[%s226 + $0x278] sm:$0xff]
        %v408 = vld [vmem:[%s226 + $0x280] sm:$0xff]
        %v409 = vld [vmem:[%s226 + $0x288] sm:$0xff]
        %v410 = vld [vmem:[%s226 + $0x290] sm:$0xff]
        %v411 = vld [vmem:[%s226 + $0x298] sm:$0xff]
        %v412 = vld [vmem:[%s226 + $0x2a0] sm:$0xff]
        %v413 = vld [vmem:[%s226 + $0x2a8] sm:$0xff]
        %v414 = vld [vmem:[%s226 + $0x2b0] sm:$0xff]
        %v415 = vld [vmem:[%s226 + $0x2b8] sm:$0xff]
        %v416 = vld [vmem:[%s226 + $0x2c0] sm:$0xff]
        %v417 = vld [vmem:[%s226 + $0x2c8] sm:$0xff]
        %v418 = vld [vmem:[%s226 + $0x2d0] sm:$0xff]
        %v419 = vld [vmem:[%s226 + $0x2d8] sm:$0xff]
        %v420 = vld [vmem:[%s226 + $0x2e0] sm:$0xff]
        %v421 = vld [vmem:[%s226 + $0x2e8] sm:$0xff]
        %v422 = vld [vmem:[%s226 + $0x2f0] sm:$0xff]
        %v423 = vld [vmem:[%s226 + $0x2f8] sm:$0xff]
        %v424 = vld [vmem:[%s226 + $0x300] sm:$0xff]
        %v425 = vld [vmem:[%s226 + $0x308] sm:$0xff]
        %v426 = vld [vmem:[%s226 + $0x310] sm:$0xff]
        %v427 = vld [vmem:[%s226 + $0x318] sm:$0xff]
        %v428 = vld [vmem:[%s226 + $0x320] sm:$0xff]
        %v429 = vld [vmem:[%s226 + $0x328] sm:$0xff]
        %v430 = vld [vmem:[%s226 + $0x330] sm:$0xff]
        %v431 = vld [vmem:[%s226 + $0x338] sm:$0xff]
        %v432 = vld [vmem:[%s226 + $0x340] sm:$0xff]
        %v433 = vld [vmem:[%s226 + $0x348] sm:$0xff]
        %v434 = vld [vmem:[%s226 + $0x350] sm:$0xff]
        %v435 = vld [vmem:[%s226 + $0x358] sm:$0xff]
        %v436 = vld [vmem:[%s226 + $0x360] sm:$0xff]
        %v437 = vld [vmem:[%s226 + $0x368] sm:$0xff]
        %v438 = vld [vmem:[%s226 + $0x370] sm:$0xff]
        %v439 = vld [vmem:[%s226 + $0x378] sm:$0xff]
        %v440 = vld [vmem:[%s226 + $0x380] sm:$0xff]
        %v441 = vld [vmem:[%s226 + $0x388] sm:$0xff]
        %v442 = vld [vmem:[%s226 + $0x390] sm:$0xff]
        %v443 = vld [vmem:[%s226 + $0x398] sm:$0xff]
        %v444 = vld [vmem:[%s226 + $0x3a0] sm:$0xff]
        %v445 = vld [vmem:[%s226 + $0x3a8] sm:$0xff]
        %v446 = vld [vmem:[%s226 + $0x3b0] sm:$0xff]
        %v447 = vld [vmem:[%s226 + $0x3b8] sm:$0xff]
        %v448 = vld [vmem:[%s226 + $0x3c0] sm:$0xff]
        %v449 = vld [vmem:[%s226 + $0x3c8] sm:$0xff]
        %v450 = vld [vmem:[%s226 + $0x3d0] sm:$0xff]
        %v451 = vld [vmem:[%s226 + $0x3d8] sm:$0xff]
        %v452 = vld [vmem:[%s226 + $0x3e0] sm:$0xff]
        %v453 = vld [vmem:[%s226 + $0x3e8] sm:$0xff]
        %v454 = vld [vmem:[%s226 + $0x3f0] sm:$0xff]
        %v455 = vld [vmem:[%s226 + $0x3f8] sm:$0xff]
        %v456 = vld [vmem:[%s226 + $0x400] sm:$0xff]
        %v457 = vld [vmem:[%s226 + $0x408] sm:$0xff]
        %v458 = vld [vmem:[%s226 + $0x410] sm:$0xff]
        %v459 = vld [vmem:[%s226 + $0x418] sm:$0xff]
        %v460 = vld [vmem:[%s226 + $0x420] sm:$0xff]
        %v461 = vld [vmem:[%s226 + $0x428] sm:$0xff]
        %v462 = vld [vmem:[%s226 + $0x430] sm:$0xff]
        %v463 = vld [vmem:[%s226 + $0x438] sm:$0xff]
        %v464 = vld [vmem:[%s226 + $0x440] sm:$0xff]
        %v465 = vld [vmem:[%s226 + $0x448] sm:$0xff]
        %v466 = vld [vmem:[%s226 + $0x450] sm:$0xff]
        %v467 = vld [vmem:[%s226 + $0x458] sm:$0xff]
        %v468 = vld [vmem:[%s226 + $0x460] sm:$0xff]
        %v469 = vld [vmem:[%s226 + $0x468] sm:$0xff]
        %v470 = vld [vmem:[%s226 + $0x470] sm:$0xff]
        %v471 = vld [vmem:[%s226 + $0x478] sm:$0xff]
        %v472 = vld [vmem:[%s226 + $0x480] sm:$0xff]
        %v473 = vld [vmem:[%s226 + $0x488] sm:$0xff]
        %v474 = vld [vmem:[%s226 + $0x490] sm:$0xff]
        %v475 = vld [vmem:[%s226 + $0x498] sm:$0xff]
        %v476 = vld [vmem:[%s226 + $0x4a0] sm:$0xff]
        %v477 = vld [vmem:[%s226 + $0x4a8] sm:$0xff]
        %v478 = vld [vmem:[%s226 + $0x4b0] sm:$0xff]
        %v479 = vld [vmem:[%s226 + $0x4b8] sm:$0xff]
        %v480 = vld [vmem:[%s226 + $0x4c0] sm:$0xff]
        %v481 = vld [vmem:[%s226 + $0x4c8] sm:$0xff]
        %v482 = vld [vmem:[%s226 + $0x4d0] sm:$0xff]
        %v483 = vld [vmem:[%s226 + $0x4d8] sm:$0xff]
        %v484 = vld [vmem:[%s226 + $0x4e0] sm:$0xff]
        %v485 = vld [vmem:[%s226 + $0x4e8] sm:$0xff]
        %v486 = vld [vmem:[%s226 + $0x4f0] sm:$0xff]
        %v487 = vld [vmem:[%s226 + $0x4f8] sm:$0xff]
        %v488 = vld [vmem:[%s226 + $0x500] sm:$0xff]
        %v489 = vld [vmem:[%s226 + $0x508] sm:$0xff]
        %v490 = vld [vmem:[%s226 + $0x510] sm:$0xff]
        %v491 = vld [vmem:[%s226 + $0x518] sm:$0xff]
        %v492 = vld [vmem:[%s226 + $0x520] sm:$0xff]
        %v493 = vld [vmem:[%s226 + $0x528] sm:$0xff]
        %v494 = vld [vmem:[%s226 + $0x530] sm:$0xff]
        %v495 = vld [vmem:[%s226 + $0x538] sm:$0xff]
        %v496 = vld [vmem:[%s226 + $0x540] sm:$0xff]
        %v497 = vld [vmem:[%s226 + $0x548] sm:$0xff]
        %v498 = vld [vmem:[%s226 + $0x550] sm:$0xff]
        %v499 = vld [vmem:[%s226 + $0x558] sm:$0xff]
        %v500 = vld [vmem:[%s226 + $0x560] sm:$0xff]
        %v501 = vld [vmem:[%s226 + $0x568] sm:$0xff]
        %v502 = vld [vmem:[%s226 + $0x570] sm:$0xff]
        %v503 = vld [vmem:[%s226 + $0x578] sm:$0xff]
        %v504 = vld [vmem:[%s226 + $0x580] sm:$0xff]
        %v505 = vld [vmem:[%s226 + $0x588] sm:$0xff]
        %v506 = vld [vmem:[%s226 + $0x590] sm:$0xff]
        %v507 = vld [vmem:[%s226 + $0x598] sm:$0xff]
        %v508 = vld [vmem:[%s226 + $0x5a0] sm:$0xff]
        %v509 = vld [vmem:[%s226 + $0x5a8] sm:$0xff]
        %v510 = vld [vmem:[%s226 + $0x5b0] sm:$0xff]
        %v511 = vld [vmem:[%s226 + $0x5b8] sm:$0xff]
        %v512 = vld [vmem:[%s226 + $0x5c0] sm:$0xff]
        %v513 = vld [vmem:[%s226 + $0x5c8] sm:$0xff]
        %v514 = vld [vmem:[%s226 + $0x5d0] sm:$0xff]
        %v515 = vld [vmem:[%s226 + $0x5d8] sm:$0xff]
        %v516 = vld [vmem:[%s226 + $0x5e0] sm:$0xff]
        %v517 = vld [vmem:[%s226 + $0x5e8] sm:$0xff]
        %v518 = vld [vmem:[%s226 + $0x5f0] sm:$0xff]
        %v519 = vld [vmem:[%s226 + $0x5f8] sm:$0xff]
        %v520 = vld [vmem:[%s226 + $0x600] sm:$0xff]
        %v521 = vld [vmem:[%s226 + $0x608] sm:$0xff]
        %v522 = vld [vmem:[%s226 + $0x610] sm:$0xff]
        %v523 = vld [vmem:[%s226 + $0x618] sm:$0xff]
        %v524 = vld [vmem:[%s226 + $0x620] sm:$0xff]
        %v525 = vld [vmem:[%s226 + $0x628] sm:$0xff]
        %v526 = vld [vmem:[%s226 + $0x630] sm:$0xff]
        %v527 = vld [vmem:[%s226 + $0x638] sm:$0xff]
        %v528 = vld [vmem:[%s226 + $0x640] sm:$0xff]
        %v529 = vld [vmem:[%s226 + $0x648] sm:$0xff]
        %v530 = vld [vmem:[%s226 + $0x650] sm:$0xff]
        %v531 = vld [vmem:[%s226 + $0x658] sm:$0xff]
        %v532 = vld [vmem:[%s226 + $0x660] sm:$0xff]
        %v533 = vld [vmem:[%s226 + $0x668] sm:$0xff]
        %v534 = vld [vmem:[%s226 + $0x670] sm:$0xff]
        %v535 = vld [vmem:[%s226 + $0x678] sm:$0xff]
        %v536 = vld [vmem:[%s226 + $0x680] sm:$0xff]
        %v537 = vld [vmem:[%s226 + $0x688] sm:$0xff]
        %v538 = vld [vmem:[%s226 + $0x690] sm:$0xff]
        %v539 = vld [vmem:[%s226 + $0x698] sm:$0xff]
        %v540 = vld [vmem:[%s226 + $0x6a0] sm:$0xff]
        %v541 = vld [vmem:[%s226 + $0x6a8] sm:$0xff]
        %v542 = vld [vmem:[%s226 + $0x6b0] sm:$0xff]
        %v543 = vld [vmem:[%s226 + $0x6b8] sm:$0xff]
        %v544 = vld [vmem:[%s226 + $0x6c0] sm:$0xff]
        %v545 = vld [vmem:[%s226 + $0x6c8] sm:$0xff]
        %v546 = vld [vmem:[%s226 + $0x6d0] sm:$0xff]
        %v547 = vld [vmem:[%s226 + $0x6d8] sm:$0xff]
        %v548 = vld [vmem:[%s226 + $0x6e0] sm:$0xff]
        %v549 = vld [vmem:[%s226 + $0x6e8] sm:$0xff]
        %v550 = vld [vmem:[%s226 + $0x6f0] sm:$0xff]
        %v551 = vld [vmem:[%s226 + $0x6f8] sm:$0xff]
        %v552 = vld [vmem:[%s226 + $0x700] sm:$0xff]
        %v553 = vld [vmem:[%s226 + $0x708] sm:$0xff]
        %v554 = vld [vmem:[%s226 + $0x710] sm:$0xff]
        %v555 = vld [vmem:[%s226 + $0x718] sm:$0xff]
        %v556 = vld [vmem:[%s226 + $0x720] sm:$0xff]
        %v557 = vld [vmem:[%s226 + $0x728] sm:$0xff]
        %v558 = vld [vmem:[%s226 + $0x730] sm:$0xff]
        %v559 = vld [vmem:[%s226 + $0x738] sm:$0xff]
        %v560 = vld [vmem:[%s226 + $0x740] sm:$0xff]
        %v561 = vld [vmem:[%s226 + $0x748] sm:$0xff]
        %v562 = vld [vmem:[%s226 + $0x750] sm:$0xff]
        %v563 = vld [vmem:[%s226 + $0x758] sm:$0xff]
        %v564 = vld [vmem:[%s226 + $0x760] sm:$0xff]
        %v565 = vld [vmem:[%s226 + $0x768] sm:$0xff]
        %v566 = vld [vmem:[%s226 + $0x770] sm:$0xff]
        %v567 = vld [vmem:[%s226 + $0x778] sm:$0xff]
        %v568 = vld [vmem:[%s226 + $0x780] sm:$0xff]
        %v569 = vld [vmem:[%s226 + $0x788] sm:$0xff]
        %v570 = vld [vmem:[%s226 + $0x790] sm:$0xff]
        %v571 = vld [vmem:[%s226 + $0x798] sm:$0xff]
        %v572 = vld [vmem:[%s226 + $0x7a0] sm:$0xff]
        %v573 = vld [vmem:[%s226 + $0x7a8] sm:$0xff]
        %v574 = vld [vmem:[%s226 + $0x7b0] sm:$0xff]
        %v575 = vld [vmem:[%s226 + $0x7b8] sm:$0xff]
        %v576 = vld [vmem:[%s226 + $0x7c0] sm:$0xff]
        %v577 = vld [vmem:[%s226 + $0x7c8] sm:$0xff]
        %v578 = vld [vmem:[%s226 + $0x7d0] sm:$0xff]
        %v579 = vld [vmem:[%s226 + $0x7d8] sm:$0xff]
        %v580 = vld [vmem:[%s226 + $0x7e0] sm:$0xff]
        %v581 = vld [vmem:[%s226 + $0x7e8] sm:$0xff]
        %v582 = vld [vmem:[%s226 + $0x7f0] sm:$0xff]
        %v583 = vld [vmem:[%s226 + $0x7f8] sm:$0xff]
        %v608 = vunpack.c.l.b16 %v304
        %v609 = vunpack.c.h.b16 %v304
        %v610 = vunpack.c.l.b16 %v305
        %v611 = vunpack.c.h.b16 %v305
        %v612 = vunpack.c.l.b16 %v306
        %v613 = vunpack.c.h.b16 %v306
        %v614 = vunpack.c.l.b16 %v307
        %v615 = vunpack.c.h.b16 %v307
        %v616 = vunpack.c.l.b16 %v308
        %v617 = vunpack.c.h.b16 %v308
        %v618 = vunpack.c.l.b16 %v309
        %v619 = vunpack.c.h.b16 %v309
        %v620 = vunpack.c.l.b16 %v310
        %v621 = vunpack.c.h.b16 %v310
        %v622 = vunpack.c.l.b16 %v311
        %v623 = vunpack.c.h.b16 %v311
        %v624 = vunpack.c.l.b16 %v312
        %v625 = vunpack.c.h.b16 %v312
        %v626 = vunpack.c.l.b16 %v313
        %v627 = vunpack.c.h.b16 %v313
        %v628 = vunpack.c.l.b16 %v314
        %v629 = vunpack.c.h.b16 %v314
        %v630 = vunpack.c.l.b16 %v315
        %v631 = vunpack.c.h.b16 %v315
        %v632 = vunpack.c.l.b16 %v316
        %v633 = vunpack.c.h.b16 %v316
        %v634 = vunpack.c.l.b16 %v317
        %v635 = vunpack.c.h.b16 %v317
        %v636 = vunpack.c.l.b16 %v318
        %v637 = vunpack.c.h.b16 %v318
        %v638 = vunpack.c.l.b16 %v319
        %v639 = vunpack.c.h.b16 %v319
        %v640 = vunpack.c.l.b16 %v320
        %v641 = vunpack.c.h.b16 %v320
        %v642 = vunpack.c.l.b16 %v321
        %v643 = vunpack.c.h.b16 %v321
        %v644 = vunpack.c.l.b16 %v322
        %v645 = vunpack.c.h.b16 %v322
        %v646 = vunpack.c.l.b16 %v323
        %v647 = vunpack.c.h.b16 %v323
        %v648 = vunpack.c.l.b16 %v324
        %v649 = vunpack.c.h.b16 %v324
        %v650 = vunpack.c.l.b16 %v325
        %v651 = vunpack.c.h.b16 %v325
        %v652 = vunpack.c.l.b16 %v326
        %v653 = vunpack.c.h.b16 %v326
        %v654 = vunpack.c.l.b16 %v327
        %v655 = vunpack.c.h.b16 %v327
        %v656 = vpack.c.b16 %v624, %v608
        %v657 = vpack.c.b16 %v625, %v609
        %v658 = vpack.c.b16 %v626, %v610
        %v659 = vpack.c.b16 %v627, %v611
        %v660 = vpack.c.b16 %v628, %v612
        %v661 = vpack.c.b16 %v629, %v613
        %v662 = vpack.c.b16 %v630, %v614
        %v663 = vpack.c.b16 %v631, %v615
        %v664 = vpack.c.b16 %v632, %v616
        %v665 = vpack.c.b16 %v633, %v617
        %v666 = vpack.c.b16 %v634, %v618
        %v667 = vpack.c.b16 %v635, %v619
        %v668 = vpack.c.b16 %v636, %v620
        %v669 = vpack.c.b16 %v637, %v621
        %v670 = vpack.c.b16 %v638, %v622
        %v671 = vpack.c.b16 %v639, %v623
        %v672 = vpack.c.b16 %v640, %v640
        %v673 = vpack.c.b16 %v641, %v641
        %v674 = vpack.c.b16 %v642, %v642
        %v675 = vpack.c.b16 %v643, %v643
        %v676 = vpack.c.b16 %v644, %v644
        %v677 = vpack.c.b16 %v645, %v645
        %v678 = vpack.c.b16 %v646, %v646
        %v679 = vpack.c.b16 %v647, %v647
        %v680 = vpack.c.b16 %v648, %v648
        %v681 = vpack.c.b16 %v649, %v649
        %v682 = vpack.c.b16 %v650, %v650
        %v683 = vpack.c.b16 %v651, %v651
        %v684 = vpack.c.b16 %v652, %v652
        %v685 = vpack.c.b16 %v653, %v653
        %v686 = vpack.c.b16 %v654, %v654
        %v687 = vpack.c.b16 %v655, %v655
        %v976 = vunpack.c.l.b16 %v328
        %v977 = vunpack.c.h.b16 %v328
        %v978 = vunpack.c.l.b16 %v329
        %v979 = vunpack.c.h.b16 %v329
        %v980 = vunpack.c.l.b16 %v330
        %v981 = vunpack.c.h.b16 %v330
        %v982 = vunpack.c.l.b16 %v331
        %v983 = vunpack.c.h.b16 %v331
        %v984 = vunpack.c.l.b16 %v332
        %v985 = vunpack.c.h.b16 %v332
        %v986 = vunpack.c.l.b16 %v333
        %v987 = vunpack.c.h.b16 %v333
        %v988 = vunpack.c.l.b16 %v334
        %v989 = vunpack.c.h.b16 %v334
        %v990 = vunpack.c.l.b16 %v335
        %v991 = vunpack.c.h.b16 %v335
        %v992 = vunpack.c.l.b16 %v336
        %v993 = vunpack.c.h.b16 %v336
        %v994 = vunpack.c.l.b16 %v337
        %v995 = vunpack.c.h.b16 %v337
        %v996 = vunpack.c.l.b16 %v338
        %v997 = vunpack.c.h.b16 %v338
        %v998 = vunpack.c.l.b16 %v339
        %v999 = vunpack.c.h.b16 %v339
        %v1000 = vunpack.c.l.b16 %v340
        %v1001 = vunpack.c.h.b16 %v340
        %v1002 = vunpack.c.l.b16 %v341
        %v1003 = vunpack.c.h.b16 %v341
        %v1004 = vunpack.c.l.b16 %v342
        %v1005 = vunpack.c.h.b16 %v342
        %v1006 = vunpack.c.l.b16 %v343
        %v1007 = vunpack.c.h.b16 %v343
        %v1008 = vunpack.c.l.b16 %v344
        %v1009 = vunpack.c.h.b16 %v344
        %v1010 = vunpack.c.l.b16 %v345
        %v1011 = vunpack.c.h.b16 %v345
        %v1012 = vunpack.c.l.b16 %v346
        %v1013 = vunpack.c.h.b16 %v346
        %v1014 = vunpack.c.l.b16 %v347
        %v1015 = vunpack.c.h.b16 %v347
        %v1016 = vunpack.c.l.b16 %v348
        %v1017 = vunpack.c.h.b16 %v348
        %v1018 = vunpack.c.l.b16 %v349
        %v1019 = vunpack.c.h.b16 %v349
        %v1020 = vunpack.c.l.b16 %v350
        %v1021 = vunpack.c.h.b16 %v350
        %v1022 = vunpack.c.l.b16 %v351
        %v1023 = vunpack.c.h.b16 %v351
        %v1024 = vunpack.c.l.b16 %v352
        %v1025 = vunpack.c.h.b16 %v352
        %v1026 = vunpack.c.l.b16 %v353
        %v1027 = vunpack.c.h.b16 %v353
        %v1028 = vunpack.c.l.b16 %v354
        %v1029 = vunpack.c.h.b16 %v354
        %v1030 = vunpack.c.l.b16 %v355
        %v1031 = vunpack.c.h.b16 %v355
        %v1032 = vunpack.c.l.b16 %v356
        %v1033 = vunpack.c.h.b16 %v356
        %v1034 = vunpack.c.l.b16 %v357
        %v1035 = vunpack.c.h.b16 %v357
        %v1036 = vunpack.c.l.b16 %v358
        %v1037 = vunpack.c.h.b16 %v358
        %v1038 = vunpack.c.l.b16 %v359
        %v1039 = vunpack.c.h.b16 %v359
        %v1040 = vunpack.c.l.b16 %v360
        %v1041 = vunpack.c.h.b16 %v360
        %v1042 = vunpack.c.l.b16 %v361
        %v1043 = vunpack.c.h.b16 %v361
        %v1044 = vunpack.c.l.b16 %v362
        %v1045 = vunpack.c.h.b16 %v362
        %v1046 = vunpack.c.l.b16 %v363
        %v1047 = vunpack.c.h.b16 %v363
        %v1048 = vunpack.c.l.b16 %v364
        %v1049 = vunpack.c.h.b16 %v364
        %v1050 = vunpack.c.l.b16 %v365
        %v1051 = vunpack.c.h.b16 %v365
        %v1052 = vunpack.c.l.b16 %v366
        %v1053 = vunpack.c.h.b16 %v366
        %v1054 = vunpack.c.l.b16 %v367
        %v1055 = vunpack.c.h.b16 %v367
        %v1056 = vunpack.c.l.b16 %v368
        %v1057 = vunpack.c.h.b16 %v368
        %v1058 = vunpack.c.l.b16 %v369
        %v1059 = vunpack.c.h.b16 %v369
        %v1060 = vunpack.c.l.b16 %v370
        %v1061 = vunpack.c.h.b16 %v370
        %v1062 = vunpack.c.l.b16 %v371
        %v1063 = vunpack.c.h.b16 %v371
        %v1064 = vunpack.c.l.b16 %v372
        %v1065 = vunpack.c.h.b16 %v372
        %v1066 = vunpack.c.l.b16 %v373
        %v1067 = vunpack.c.h.b16 %v373
        %v1068 = vunpack.c.l.b16 %v374
        %v1069 = vunpack.c.h.b16 %v374
        %v1070 = vunpack.c.l.b16 %v375
        %v1071 = vunpack.c.h.b16 %v375
        %v1072 = vunpack.c.l.b16 %v376
        %v1073 = vunpack.c.h.b16 %v376
        %v1074 = vunpack.c.l.b16 %v377
        %v1075 = vunpack.c.h.b16 %v377
        %v1076 = vunpack.c.l.b16 %v378
        %v1077 = vunpack.c.h.b16 %v378
        %v1078 = vunpack.c.l.b16 %v379
        %v1079 = vunpack.c.h.b16 %v379
        %v1080 = vunpack.c.l.b16 %v380
        %v1081 = vunpack.c.h.b16 %v380
        %v1082 = vunpack.c.l.b16 %v381
        %v1083 = vunpack.c.h.b16 %v381
        %v1084 = vunpack.c.l.b16 %v382
        %v1085 = vunpack.c.h.b16 %v382
        %v1086 = vunpack.c.l.b16 %v383
        %v1087 = vunpack.c.h.b16 %v383
        %v1088 = vunpack.c.l.b16 %v384
        %v1089 = vunpack.c.h.b16 %v384
        %v1090 = vunpack.c.l.b16 %v385
        %v1091 = vunpack.c.h.b16 %v385
        %v1092 = vunpack.c.l.b16 %v386
        %v1093 = vunpack.c.h.b16 %v386
        %v1094 = vunpack.c.l.b16 %v387
        %v1095 = vunpack.c.h.b16 %v387
        %v1096 = vunpack.c.l.b16 %v388
        %v1097 = vunpack.c.h.b16 %v388
        %v1098 = vunpack.c.l.b16 %v389
        %v1099 = vunpack.c.h.b16 %v389
        %v1100 = vunpack.c.l.b16 %v390
        %v1101 = vunpack.c.h.b16 %v390
        %v1102 = vunpack.c.l.b16 %v391
        %v1103 = vunpack.c.h.b16 %v391
        %v1104 = vunpack.c.l.b16 %v392
        %v1105 = vunpack.c.h.b16 %v392
        %v1106 = vunpack.c.l.b16 %v393
        %v1107 = vunpack.c.h.b16 %v393
        %v1108 = vunpack.c.l.b16 %v394
        %v1109 = vunpack.c.h.b16 %v394
        %v1110 = vunpack.c.l.b16 %v395
        %v1111 = vunpack.c.h.b16 %v395
        %v1112 = vunpack.c.l.b16 %v396
        %v1113 = vunpack.c.h.b16 %v396
        %v1114 = vunpack.c.l.b16 %v397
        %v1115 = vunpack.c.h.b16 %v397
        %v1116 = vunpack.c.l.b16 %v398
        %v1117 = vunpack.c.h.b16 %v398
        %v1118 = vunpack.c.l.b16 %v399
        %v1119 = vunpack.c.h.b16 %v399
        %v1120 = vunpack.c.l.b16 %v400
        %v1121 = vunpack.c.h.b16 %v400
        %v1122 = vunpack.c.l.b16 %v401
        %v1123 = vunpack.c.h.b16 %v401
        %v1124 = vunpack.c.l.b16 %v402
        %v1125 = vunpack.c.h.b16 %v402
        %v1126 = vunpack.c.l.b16 %v403
        %v1127 = vunpack.c.h.b16 %v403
        %v1128 = vunpack.c.l.b16 %v404
        %v1129 = vunpack.c.h.b16 %v404
        %v1130 = vunpack.c.l.b16 %v405
        %v1131 = vunpack.c.h.b16 %v405
        %v1132 = vunpack.c.l.b16 %v406
        %v1133 = vunpack.c.h.b16 %v406
        %v1134 = vunpack.c.l.b16 %v407
        %v1135 = vunpack.c.h.b16 %v407
        %v1136 = vunpack.c.l.b16 %v408
        %v1137 = vunpack.c.h.b16 %v408
        %v1138 = vunpack.c.l.b16 %v409
        %v1139 = vunpack.c.h.b16 %v409
        %v1140 = vunpack.c.l.b16 %v410
        %v1141 = vunpack.c.h.b16 %v410
        %v1142 = vunpack.c.l.b16 %v411
        %v1143 = vunpack.c.h.b16 %v411
        %v1144 = vunpack.c.l.b16 %v412
        %v1145 = vunpack.c.h.b16 %v412
        %v1146 = vunpack.c.l.b16 %v413
        %v1147 = vunpack.c.h.b16 %v413
        %v1148 = vunpack.c.l.b16 %v414
        %v1149 = vunpack.c.h.b16 %v414
        %v1150 = vunpack.c.l.b16 %v415
        %v1151 = vunpack.c.h.b16 %v415
        %v1152 = vunpack.c.l.b16 %v416
        %v1153 = vunpack.c.h.b16 %v416
        %v1154 = vunpack.c.l.b16 %v417
        %v1155 = vunpack.c.h.b16 %v417
        %v1156 = vunpack.c.l.b16 %v418
        %v1157 = vunpack.c.h.b16 %v418
        %v1158 = vunpack.c.l.b16 %v419
        %v1159 = vunpack.c.h.b16 %v419
        %v1160 = vunpack.c.l.b16 %v420
        %v1161 = vunpack.c.h.b16 %v420
        %v1162 = vunpack.c.l.b16 %v421
        %v1163 = vunpack.c.h.b16 %v421
        %v1164 = vunpack.c.l.b16 %v422
        %v1165 = vunpack.c.h.b16 %v422
        %v1166 = vunpack.c.l.b16 %v423
        %v1167 = vunpack.c.h.b16 %v423
        %v1168 = vunpack.c.l.b16 %v424
        %v1169 = vunpack.c.h.b16 %v424
        %v1170 = vunpack.c.l.b16 %v425
        %v1171 = vunpack.c.h.b16 %v425
        %v1172 = vunpack.c.l.b16 %v426
        %v1173 = vunpack.c.h.b16 %v426
        %v1174 = vunpack.c.l.b16 %v427
        %v1175 = vunpack.c.h.b16 %v427
        %v1176 = vunpack.c.l.b16 %v428
        %v1177 = vunpack.c.h.b16 %v428
        %v1178 = vunpack.c.l.b16 %v429
        %v1179 = vunpack.c.h.b16 %v429
        %v1180 = vunpack.c.l.b16 %v430
        %v1181 = vunpack.c.h.b16 %v430
        %v1182 = vunpack.c.l.b16 %v431
        %v1183 = vunpack.c.h.b16 %v431
        %v1184 = vunpack.c.l.b16 %v432
        %v1185 = vunpack.c.h.b16 %v432
        %v1186 = vunpack.c.l.b16 %v433
        %v1187 = vunpack.c.h.b16 %v433
        %v1188 = vunpack.c.l.b16 %v434
        %v1189 = vunpack.c.h.b16 %v434
        %v1190 = vunpack.c.l.b16 %v435
        %v1191 = vunpack.c.h.b16 %v435
        %v1192 = vunpack.c.l.b16 %v436
        %v1193 = vunpack.c.h.b16 %v436
        %v1194 = vunpack.c.l.b16 %v437
        %v1195 = vunpack.c.h.b16 %v437
        %v1196 = vunpack.c.l.b16 %v438
        %v1197 = vunpack.c.h.b16 %v438
        %v1198 = vunpack.c.l.b16 %v439
        %v1199 = vunpack.c.h.b16 %v439
        %v1200 = vunpack.c.l.b16 %v440
        %v1201 = vunpack.c.h.b16 %v440
        %v1202 = vunpack.c.l.b16 %v441
        %v1203 = vunpack.c.h.b16 %v441
        %v1204 = vunpack.c.l.b16 %v442
        %v1205 = vunpack.c.h.b16 %v442
        %v1206 = vunpack.c.l.b16 %v443
        %v1207 = vunpack.c.h.b16 %v443
        %v1208 = vunpack.c.l.b16 %v444
        %v1209 = vunpack.c.h.b16 %v444
        %v1210 = vunpack.c.l.b16 %v445
        %v1211 = vunpack.c.h.b16 %v445
        %v1212 = vunpack.c.l.b16 %v446
        %v1213 = vunpack.c.h.b16 %v446
        %v1214 = vunpack.c.l.b16 %v447
        %v1215 = vunpack.c.h.b16 %v447
        %v1216 = vunpack.c.l.b16 %v448
        %v1217 = vunpack.c.h.b16 %v448
        %v1218 = vunpack.c.l.b16 %v449
        %v1219 = vunpack.c.h.b16 %v449
        %v1220 = vunpack.c.l.b16 %v450
        %v1221 = vunpack.c.h.b16 %v450
        %v1222 = vunpack.c.l.b16 %v451
        %v1223 = vunpack.c.h.b16 %v451
        %v1224 = vunpack.c.l.b16 %v452
        %v1225 = vunpack.c.h.b16 %v452
        %v1226 = vunpack.c.l.b16 %v453
        %v1227 = vunpack.c.h.b16 %v453
        %v1228 = vunpack.c.l.b16 %v454
        %v1229 = vunpack.c.h.b16 %v454
        %v1230 = vunpack.c.l.b16 %v455
        %v1231 = vunpack.c.h.b16 %v455
        %v1232 = vunpack.c.l.b16 %v456
        %v1233 = vunpack.c.h.b16 %v456
        %v1234 = vunpack.c.l.b16 %v457
        %v1235 = vunpack.c.h.b16 %v457
        %v1236 = vunpack.c.l.b16 %v458
        %v1237 = vunpack.c.h.b16 %v458
        %v1238 = vunpack.c.l.b16 %v459
        %v1239 = vunpack.c.h.b16 %v459
        %v1240 = vunpack.c.l.b16 %v460
        %v1241 = vunpack.c.h.b16 %v460
        %v1242 = vunpack.c.l.b16 %v461
        %v1243 = vunpack.c.h.b16 %v461
        %v1244 = vunpack.c.l.b16 %v462
        %v1245 = vunpack.c.h.b16 %v462
        %v1246 = vunpack.c.l.b16 %v463
        %v1247 = vunpack.c.h.b16 %v463
        %v1248 = vunpack.c.l.b16 %v464
        %v1249 = vunpack.c.h.b16 %v464
        %v1250 = vunpack.c.l.b16 %v465
        %v1251 = vunpack.c.h.b16 %v465
        %v1252 = vunpack.c.l.b16 %v466
        %v1253 = vunpack.c.h.b16 %v466
        %v1254 = vunpack.c.l.b16 %v467
        %v1255 = vunpack.c.h.b16 %v467
        %v1256 = vunpack.c.l.b16 %v468
        %v1257 = vunpack.c.h.b16 %v468
        %v1258 = vunpack.c.l.b16 %v469
        %v1259 = vunpack.c.h.b16 %v469
        %v1260 = vunpack.c.l.b16 %v470
        %v1261 = vunpack.c.h.b16 %v470
        %v1262 = vunpack.c.l.b16 %v471
        %v1263 = vunpack.c.h.b16 %v471
        %v1264 = vunpack.c.l.b16 %v472
        %v1265 = vunpack.c.h.b16 %v472
        %v1266 = vunpack.c.l.b16 %v473
        %v1267 = vunpack.c.h.b16 %v473
        %v1268 = vunpack.c.l.b16 %v474
        %v1269 = vunpack.c.h.b16 %v474
        %v1270 = vunpack.c.l.b16 %v475
        %v1271 = vunpack.c.h.b16 %v475
        %v1272 = vunpack.c.l.b16 %v476
        %v1273 = vunpack.c.h.b16 %v476
        %v1274 = vunpack.c.l.b16 %v477
        %v1275 = vunpack.c.h.b16 %v477
        %v1276 = vunpack.c.l.b16 %v478
        %v1277 = vunpack.c.h.b16 %v478
        %v1278 = vunpack.c.l.b16 %v479
        %v1279 = vunpack.c.h.b16 %v479
        %v1280 = vunpack.c.l.b16 %v480
        %v1281 = vunpack.c.h.b16 %v480
        %v1282 = vunpack.c.l.b16 %v481
        %v1283 = vunpack.c.h.b16 %v481
        %v1284 = vunpack.c.l.b16 %v482
        %v1285 = vunpack.c.h.b16 %v482
        %v1286 = vunpack.c.l.b16 %v483
        %v1287 = vunpack.c.h.b16 %v483
        %v1288 = vunpack.c.l.b16 %v484
        %v1289 = vunpack.c.h.b16 %v484
        %v1290 = vunpack.c.l.b16 %v485
        %v1291 = vunpack.c.h.b16 %v485
        %v1292 = vunpack.c.l.b16 %v486
        %v1293 = vunpack.c.h.b16 %v486
        %v1294 = vunpack.c.l.b16 %v487
        %v1295 = vunpack.c.h.b16 %v487
        %v1296 = vunpack.c.l.b16 %v488
        %v1297 = vunpack.c.h.b16 %v488
        %v1298 = vunpack.c.l.b16 %v489
        %v1299 = vunpack.c.h.b16 %v489
        %v1300 = vunpack.c.l.b16 %v490
        %v1301 = vunpack.c.h.b16 %v490
        %v1302 = vunpack.c.l.b16 %v491
        %v1303 = vunpack.c.h.b16 %v491
        %v1304 = vunpack.c.l.b16 %v492
        %v1305 = vunpack.c.h.b16 %v492
        %v1306 = vunpack.c.l.b16 %v493
        %v1307 = vunpack.c.h.b16 %v493
        %v1308 = vunpack.c.l.b16 %v494
        %v1309 = vunpack.c.h.b16 %v494
        %v1310 = vunpack.c.l.b16 %v495
        %v1311 = vunpack.c.h.b16 %v495
        %v1312 = vunpack.c.l.b16 %v496
        %v1313 = vunpack.c.h.b16 %v496
        %v1314 = vunpack.c.l.b16 %v497
        %v1315 = vunpack.c.h.b16 %v497
        %v1316 = vunpack.c.l.b16 %v498
        %v1317 = vunpack.c.h.b16 %v498
        %v1318 = vunpack.c.l.b16 %v499
        %v1319 = vunpack.c.h.b16 %v499
        %v1320 = vunpack.c.l.b16 %v500
        %v1321 = vunpack.c.h.b16 %v500
        %v1322 = vunpack.c.l.b16 %v501
        %v1323 = vunpack.c.h.b16 %v501
        %v1324 = vunpack.c.l.b16 %v502
        %v1325 = vunpack.c.h.b16 %v502
        %v1326 = vunpack.c.l.b16 %v503
        %v1327 = vunpack.c.h.b16 %v503
        %v1328 = vunpack.c.l.b16 %v504
        %v1329 = vunpack.c.h.b16 %v504
        %v1330 = vunpack.c.l.b16 %v505
        %v1331 = vunpack.c.h.b16 %v505
        %v1332 = vunpack.c.l.b16 %v506
        %v1333 = vunpack.c.h.b16 %v506
        %v1334 = vunpack.c.l.b16 %v507
        %v1335 = vunpack.c.h.b16 %v507
        %v1336 = vunpack.c.l.b16 %v508
        %v1337 = vunpack.c.h.b16 %v508
        %v1338 = vunpack.c.l.b16 %v509
        %v1339 = vunpack.c.h.b16 %v509
        %v1340 = vunpack.c.l.b16 %v510
        %v1341 = vunpack.c.h.b16 %v510
        %v1342 = vunpack.c.l.b16 %v511
        %v1343 = vunpack.c.h.b16 %v511
        %v1344 = vunpack.c.l.b16 %v512
        %v1345 = vunpack.c.h.b16 %v512
        %v1346 = vunpack.c.l.b16 %v513
        %v1347 = vunpack.c.h.b16 %v513
        %v1348 = vunpack.c.l.b16 %v514
        %v1349 = vunpack.c.h.b16 %v514
        %v1350 = vunpack.c.l.b16 %v515
        %v1351 = vunpack.c.h.b16 %v515
        %v1352 = vunpack.c.l.b16 %v516
        %v1353 = vunpack.c.h.b16 %v516
        %v1354 = vunpack.c.l.b16 %v517
        %v1355 = vunpack.c.h.b16 %v517
        %v1356 = vunpack.c.l.b16 %v518
        %v1357 = vunpack.c.h.b16 %v518
        %v1358 = vunpack.c.l.b16 %v519
        %v1359 = vunpack.c.h.b16 %v519
        %v1360 = vunpack.c.l.b16 %v520
        %v1361 = vunpack.c.h.b16 %v520
        %v1362 = vunpack.c.l.b16 %v521
        %v1363 = vunpack.c.h.b16 %v521
        %v1364 = vunpack.c.l.b16 %v522
        %v1365 = vunpack.c.h.b16 %v522
        %v1366 = vunpack.c.l.b16 %v523
        %v1367 = vunpack.c.h.b16 %v523
        %v1368 = vunpack.c.l.b16 %v524
        %v1369 = vunpack.c.h.b16 %v524
        %v1370 = vunpack.c.l.b16 %v525
        %v1371 = vunpack.c.h.b16 %v525
        %v1372 = vunpack.c.l.b16 %v526
        %v1373 = vunpack.c.h.b16 %v526
        %v1374 = vunpack.c.l.b16 %v527
        %v1375 = vunpack.c.h.b16 %v527
        %v1376 = vunpack.c.l.b16 %v528
        %v1377 = vunpack.c.h.b16 %v528
        %v1378 = vunpack.c.l.b16 %v529
        %v1379 = vunpack.c.h.b16 %v529
        %v1380 = vunpack.c.l.b16 %v530
        %v1381 = vunpack.c.h.b16 %v530
        %v1382 = vunpack.c.l.b16 %v531
        %v1383 = vunpack.c.h.b16 %v531
        %v1384 = vunpack.c.l.b16 %v532
        %v1385 = vunpack.c.h.b16 %v532
        %v1386 = vunpack.c.l.b16 %v533
        %v1387 = vunpack.c.h.b16 %v533
        %v1388 = vunpack.c.l.b16 %v534
        %v1389 = vunpack.c.h.b16 %v534
        %v1390 = vunpack.c.l.b16 %v535
        %v1391 = vunpack.c.h.b16 %v535
        %v1392 = vunpack.c.l.b16 %v536
        %v1393 = vunpack.c.h.b16 %v536
        %v1394 = vunpack.c.l.b16 %v537
        %v1395 = vunpack.c.h.b16 %v537
        %v1396 = vunpack.c.l.b16 %v538
        %v1397 = vunpack.c.h.b16 %v538
        %v1398 = vunpack.c.l.b16 %v539
        %v1399 = vunpack.c.h.b16 %v539
        %v1400 = vunpack.c.l.b16 %v540
        %v1401 = vunpack.c.h.b16 %v540
        %v1402 = vunpack.c.l.b16 %v541
        %v1403 = vunpack.c.h.b16 %v541
        %v1404 = vunpack.c.l.b16 %v542
        %v1405 = vunpack.c.h.b16 %v542
        %v1406 = vunpack.c.l.b16 %v543
        %v1407 = vunpack.c.h.b16 %v543
        %v1408 = vunpack.c.l.b16 %v544
        %v1409 = vunpack.c.h.b16 %v544
        %v1410 = vunpack.c.l.b16 %v545
        %v1411 = vunpack.c.h.b16 %v545
        %v1412 = vunpack.c.l.b16 %v546
        %v1413 = vunpack.c.h.b16 %v546
        %v1414 = vunpack.c.l.b16 %v547
        %v1415 = vunpack.c.h.b16 %v547
        %v1416 = vunpack.c.l.b16 %v548
        %v1417 = vunpack.c.h.b16 %v548
        %v1418 = vunpack.c.l.b16 %v549
        %v1419 = vunpack.c.h.b16 %v549
        %v1420 = vunpack.c.l.b16 %v550
        %v1421 = vunpack.c.h.b16 %v550
        %v1422 = vunpack.c.l.b16 %v551
        %v1423 = vunpack.c.h.b16 %v551
        %v1424 = vunpack.c.l.b16 %v552
        %v1425 = vunpack.c.h.b16 %v552
        %v1426 = vunpack.c.l.b16 %v553
        %v1427 = vunpack.c.h.b16 %v553
        %v1428 = vunpack.c.l.b16 %v554
        %v1429 = vunpack.c.h.b16 %v554
        %v1430 = vunpack.c.l.b16 %v555
        %v1431 = vunpack.c.h.b16 %v555
        %v1432 = vunpack.c.l.b16 %v556
        %v1433 = vunpack.c.h.b16 %v556
        %v1434 = vunpack.c.l.b16 %v557
        %v1435 = vunpack.c.h.b16 %v557
        %v1436 = vunpack.c.l.b16 %v558
        %v1437 = vunpack.c.h.b16 %v558
        %v1438 = vunpack.c.l.b16 %v559
        %v1439 = vunpack.c.h.b16 %v559
        %v1440 = vunpack.c.l.b16 %v560
        %v1441 = vunpack.c.h.b16 %v560
        %v1442 = vunpack.c.l.b16 %v561
        %v1443 = vunpack.c.h.b16 %v561
        %v1444 = vunpack.c.l.b16 %v562
        %v1445 = vunpack.c.h.b16 %v562
        %v1446 = vunpack.c.l.b16 %v563
        %v1447 = vunpack.c.h.b16 %v563
        %v1448 = vunpack.c.l.b16 %v564
        %v1449 = vunpack.c.h.b16 %v564
        %v1450 = vunpack.c.l.b16 %v565
        %v1451 = vunpack.c.h.b16 %v565
        %v1452 = vunpack.c.l.b16 %v566
        %v1453 = vunpack.c.h.b16 %v566
        %v1454 = vunpack.c.l.b16 %v567
        %v1455 = vunpack.c.h.b16 %v567
        %v1456 = vunpack.c.l.b16 %v568
        %v1457 = vunpack.c.h.b16 %v568
        %v1458 = vunpack.c.l.b16 %v569
        %v1459 = vunpack.c.h.b16 %v569
        %v1460 = vunpack.c.l.b16 %v570
        %v1461 = vunpack.c.h.b16 %v570
        %v1462 = vunpack.c.l.b16 %v571
        %v1463 = vunpack.c.h.b16 %v571
        %v1464 = vunpack.c.l.b16 %v572
        %v1465 = vunpack.c.h.b16 %v572
        %v1466 = vunpack.c.l.b16 %v573
        %v1467 = vunpack.c.h.b16 %v573
        %v1468 = vunpack.c.l.b16 %v574
        %v1469 = vunpack.c.h.b16 %v574
        %v1470 = vunpack.c.l.b16 %v575
        %v1471 = vunpack.c.h.b16 %v575
        %v1472 = vunpack.c.l.b16 %v576
        %v1473 = vunpack.c.h.b16 %v576
        %v1474 = vunpack.c.l.b16 %v577
        %v1475 = vunpack.c.h.b16 %v577
        %v1476 = vunpack.c.l.b16 %v578
        %v1477 = vunpack.c.h.b16 %v578
        %v1478 = vunpack.c.l.b16 %v579
        %v1479 = vunpack.c.h.b16 %v579
        %v1480 = vunpack.c.l.b16 %v580
        %v1481 = vunpack.c.h.b16 %v580
        %v1482 = vunpack.c.l.b16 %v581
        %v1483 = vunpack.c.h.b16 %v581
        %v1484 = vunpack.c.l.b16 %v582
        %v1485 = vunpack.c.h.b16 %v582
        %v1486 = vunpack.c.l.b16 %v583
        %v1487 = vunpack.c.h.b16 %v583
        %v1488 = vpack.c.b16 %v978, %v976
        %v1489 = vpack.c.b16 %v979, %v977
        %v1490 = vpack.c.b16 %v982, %v980
        %v1491 = vpack.c.b16 %v983, %v981
        %v1492 = vpack.c.b16 %v986, %v984
        %v1493 = vpack.c.b16 %v987, %v985
        %v1494 = vpack.c.b16 %v990, %v988
        %v1495 = vpack.c.b16 %v991, %v989
        %v1496 = vpack.c.b16 %v994, %v992
        %v1497 = vpack.c.b16 %v995, %v993
        %v1498 = vpack.c.b16 %v998, %v996
        %v1499 = vpack.c.b16 %v999, %v997
        %v1500 = vpack.c.b16 %v1002, %v1000
        %v1501 = vpack.c.b16 %v1003, %v1001
        %v1502 = vpack.c.b16 %v1006, %v1004
        %v1503 = vpack.c.b16 %v1007, %v1005
        %v1504 = vpack.c.b16 %v1010, %v1008
        %v1505 = vpack.c.b16 %v1011, %v1009
        %v1506 = vpack.c.b16 %v1014, %v1012
        %v1507 = vpack.c.b16 %v1015, %v1013
        %v1508 = vpack.c.b16 %v1018, %v1016
        %v1509 = vpack.c.b16 %v1019, %v1017
        %v1510 = vpack.c.b16 %v1022, %v1020
        %v1511 = vpack.c.b16 %v1023, %v1021
        %v1512 = vpack.c.b16 %v1026, %v1024
        %v1513 = vpack.c.b16 %v1027, %v1025
        %v1514 = vpack.c.b16 %v1030, %v1028
        %v1515 = vpack.c.b16 %v1031, %v1029
        %v1516 = vpack.c.b16 %v1034, %v1032
        %v1517 = vpack.c.b16 %v1035, %v1033
        %v1518 = vpack.c.b16 %v1038, %v1036
        %v1519 = vpack.c.b16 %v1039, %v1037
        %v1520 = vpack.c.b16 %v1042, %v1040
        %v1521 = vpack.c.b16 %v1043, %v1041
        %v1522 = vpack.c.b16 %v1046, %v1044
        %v1523 = vpack.c.b16 %v1047, %v1045
        %v1524 = vpack.c.b16 %v1050, %v1048
        %v1525 = vpack.c.b16 %v1051, %v1049
        %v1526 = vpack.c.b16 %v1054, %v1052
        %v1527 = vpack.c.b16 %v1055, %v1053
        %v1528 = vpack.c.b16 %v1058, %v1056
        %v1529 = vpack.c.b16 %v1059, %v1057
        %v1530 = vpack.c.b16 %v1062, %v1060
        %v1531 = vpack.c.b16 %v1063, %v1061
        %v1532 = vpack.c.b16 %v1066, %v1064
        %v1533 = vpack.c.b16 %v1067, %v1065
        %v1534 = vpack.c.b16 %v1070, %v1068
        %v1535 = vpack.c.b16 %v1071, %v1069
        %v1536 = vpack.c.b16 %v1074, %v1072
        %v1537 = vpack.c.b16 %v1075, %v1073
        %v1538 = vpack.c.b16 %v1078, %v1076
        %v1539 = vpack.c.b16 %v1079, %v1077
        %v1540 = vpack.c.b16 %v1082, %v1080
        %v1541 = vpack.c.b16 %v1083, %v1081
        %v1542 = vpack.c.b16 %v1086, %v1084
        %v1543 = vpack.c.b16 %v1087, %v1085
        %v1544 = vpack.c.b16 %v1090, %v1088
        %v1545 = vpack.c.b16 %v1091, %v1089
        %v1546 = vpack.c.b16 %v1094, %v1092
        %v1547 = vpack.c.b16 %v1095, %v1093
        %v1548 = vpack.c.b16 %v1098, %v1096
        %v1549 = vpack.c.b16 %v1099, %v1097
        %v1550 = vpack.c.b16 %v1102, %v1100
        %v1551 = vpack.c.b16 %v1103, %v1101
        %v1552 = vpack.c.b16 %v1106, %v1104
        %v1553 = vpack.c.b16 %v1107, %v1105
        %v1554 = vpack.c.b16 %v1110, %v1108
        %v1555 = vpack.c.b16 %v1111, %v1109
        %v1556 = vpack.c.b16 %v1114, %v1112
        %v1557 = vpack.c.b16 %v1115, %v1113
        %v1558 = vpack.c.b16 %v1118, %v1116
        %v1559 = vpack.c.b16 %v1119, %v1117
        %v1560 = vpack.c.b16 %v1122, %v1120
        %v1561 = vpack.c.b16 %v1123, %v1121
        %v1562 = vpack.c.b16 %v1126, %v1124
        %v1563 = vpack.c.b16 %v1127, %v1125
        %v1564 = vpack.c.b16 %v1130, %v1128
        %v1565 = vpack.c.b16 %v1131, %v1129
        %v1566 = vpack.c.b16 %v1134, %v1132
        %v1567 = vpack.c.b16 %v1135, %v1133
        %v1568 = vpack.c.b16 %v1138, %v1136
        %v1569 = vpack.c.b16 %v1139, %v1137
        %v1570 = vpack.c.b16 %v1142, %v1140
        %v1571 = vpack.c.b16 %v1143, %v1141
        %v1572 = vpack.c.b16 %v1146, %v1144
        %v1573 = vpack.c.b16 %v1147, %v1145
        %v1574 = vpack.c.b16 %v1150, %v1148
        %v1575 = vpack.c.b16 %v1151, %v1149
        %v1576 = vpack.c.b16 %v1154, %v1152
        %v1577 = vpack.c.b16 %v1155, %v1153
        %v1578 = vpack.c.b16 %v1158, %v1156
        %v1579 = vpack.c.b16 %v1159, %v1157
        %v1580 = vpack.c.b16 %v1162, %v1160
        %v1581 = vpack.c.b16 %v1163, %v1161
        %v1582 = vpack.c.b16 %v1166, %v1164
        %v1583 = vpack.c.b16 %v1167, %v1165
        %v1584 = vpack.c.b16 %v1170, %v1168
        %v1585 = vpack.c.b16 %v1171, %v1169
        %v1586 = vpack.c.b16 %v1174, %v1172
        %v1587 = vpack.c.b16 %v1175, %v1173
        %v1588 = vpack.c.b16 %v1178, %v1176
        %v1589 = vpack.c.b16 %v1179, %v1177
        %v1590 = vpack.c.b16 %v1182, %v1180
        %v1591 = vpack.c.b16 %v1183, %v1181
        %v1592 = vpack.c.b16 %v1186, %v1184
        %v1593 = vpack.c.b16 %v1187, %v1185
        %v1594 = vpack.c.b16 %v1190, %v1188
        %v1595 = vpack.c.b16 %v1191, %v1189
        %v1596 = vpack.c.b16 %v1194, %v1192
        %v1597 = vpack.c.b16 %v1195, %v1193
        %v1598 = vpack.c.b16 %v1198, %v1196
        %v1599 = vpack.c.b16 %v1199, %v1197
        %v1600 = vpack.c.b16 %v1202, %v1200
        %v1601 = vpack.c.b16 %v1203, %v1201
        %v1602 = vpack.c.b16 %v1206, %v1204
        %v1603 = vpack.c.b16 %v1207, %v1205
        %v1604 = vpack.c.b16 %v1210, %v1208
        %v1605 = vpack.c.b16 %v1211, %v1209
        %v1606 = vpack.c.b16 %v1214, %v1212
        %v1607 = vpack.c.b16 %v1215, %v1213
        %v1608 = vpack.c.b16 %v1218, %v1216
        %v1609 = vpack.c.b16 %v1219, %v1217
        %v1610 = vpack.c.b16 %v1222, %v1220
        %v1611 = vpack.c.b16 %v1223, %v1221
        %v1612 = vpack.c.b16 %v1226, %v1224
        %v1613 = vpack.c.b16 %v1227, %v1225
        %v1614 = vpack.c.b16 %v1230, %v1228
        %v1615 = vpack.c.b16 %v1231, %v1229
        %v1616 = vpack.c.b16 %v1234, %v1232
        %v1617 = vpack.c.b16 %v1235, %v1233
        %v1618 = vpack.c.b16 %v1238, %v1236
        %v1619 = vpack.c.b16 %v1239, %v1237
        %v1620 = vpack.c.b16 %v1242, %v1240
        %v1621 = vpack.c.b16 %v1243, %v1241
        %v1622 = vpack.c.b16 %v1246, %v1244
        %v1623 = vpack.c.b16 %v1247, %v1245
        %v1624 = vpack.c.b16 %v1250, %v1248
        %v1625 = vpack.c.b16 %v1251, %v1249
        %v1626 = vpack.c.b16 %v1254, %v1252
        %v1627 = vpack.c.b16 %v1255, %v1253
        %v1628 = vpack.c.b16 %v1258, %v1256
        %v1629 = vpack.c.b16 %v1259, %v1257
        %v1630 = vpack.c.b16 %v1262, %v1260
        %v1631 = vpack.c.b16 %v1263, %v1261
        %v1632 = vpack.c.b16 %v1266, %v1264
        %v1633 = vpack.c.b16 %v1267, %v1265
        %v1634 = vpack.c.b16 %v1270, %v1268
        %v1635 = vpack.c.b16 %v1271, %v1269
        %v1636 = vpack.c.b16 %v1274, %v1272
        %v1637 = vpack.c.b16 %v1275, %v1273
        %v1638 = vpack.c.b16 %v1278, %v1276
        %v1639 = vpack.c.b16 %v1279, %v1277
        %v1640 = vpack.c.b16 %v1282, %v1280
        %v1641 = vpack.c.b16 %v1283, %v1281
        %v1642 = vpack.c.b16 %v1286, %v1284
        %v1643 = vpack.c.b16 %v1287, %v1285
        %v1644 = vpack.c.b16 %v1290, %v1288
        %v1645 = vpack.c.b16 %v1291, %v1289
        %v1646 = vpack.c.b16 %v1294, %v1292
        %v1647 = vpack.c.b16 %v1295, %v1293
        %v1648 = vpack.c.b16 %v1298, %v1296
        %v1649 = vpack.c.b16 %v1299, %v1297
        %v1650 = vpack.c.b16 %v1302, %v1300
        %v1651 = vpack.c.b16 %v1303, %v1301
        %v1652 = vpack.c.b16 %v1306, %v1304
        %v1653 = vpack.c.b16 %v1307, %v1305
        %v1654 = vpack.c.b16 %v1310, %v1308
        %v1655 = vpack.c.b16 %v1311, %v1309
        %v1656 = vpack.c.b16 %v1314, %v1312
        %v1657 = vpack.c.b16 %v1315, %v1313
        %v1658 = vpack.c.b16 %v1318, %v1316
        %v1659 = vpack.c.b16 %v1319, %v1317
        %v1660 = vpack.c.b16 %v1322, %v1320
        %v1661 = vpack.c.b16 %v1323, %v1321
        %v1662 = vpack.c.b16 %v1326, %v1324
        %v1663 = vpack.c.b16 %v1327, %v1325
        %v1664 = vpack.c.b16 %v1330, %v1328
        %v1665 = vpack.c.b16 %v1331, %v1329
        %v1666 = vpack.c.b16 %v1334, %v1332
        %v1667 = vpack.c.b16 %v1335, %v1333
        %v1668 = vpack.c.b16 %v1338, %v1336
        %v1669 = vpack.c.b16 %v1339, %v1337
        %v1670 = vpack.c.b16 %v1342, %v1340
        %v1671 = vpack.c.b16 %v1343, %v1341
        %v1672 = vpack.c.b16 %v1346, %v1344
        %v1673 = vpack.c.b16 %v1347, %v1345
        %v1674 = vpack.c.b16 %v1350, %v1348
        %v1675 = vpack.c.b16 %v1351, %v1349
        %v1676 = vpack.c.b16 %v1354, %v1352
        %v1677 = vpack.c.b16 %v1355, %v1353
        %v1678 = vpack.c.b16 %v1358, %v1356
        %v1679 = vpack.c.b16 %v1359, %v1357
        %v1680 = vpack.c.b16 %v1362, %v1360
        %v1681 = vpack.c.b16 %v1363, %v1361
        %v1682 = vpack.c.b16 %v1366, %v1364
        %v1683 = vpack.c.b16 %v1367, %v1365
        %v1684 = vpack.c.b16 %v1370, %v1368
        %v1685 = vpack.c.b16 %v1371, %v1369
        %v1686 = vpack.c.b16 %v1374, %v1372
        %v1687 = vpack.c.b16 %v1375, %v1373
        %v1688 = vpack.c.b16 %v1378, %v1376
        %v1689 = vpack.c.b16 %v1379, %v1377
        %v1690 = vpack.c.b16 %v1382, %v1380
        %v1691 = vpack.c.b16 %v1383, %v1381
        %v1692 = vpack.c.b16 %v1386, %v1384
        %v1693 = vpack.c.b16 %v1387, %v1385
        %v1694 = vpack.c.b16 %v1390, %v1388
        %v1695 = vpack.c.b16 %v1391, %v1389
        %v1696 = vpack.c.b16 %v1394, %v1392
        %v1697 = vpack.c.b16 %v1395, %v1393
        %v1698 = vpack.c.b16 %v1398, %v1396
        %v1699 = vpack.c.b16 %v1399, %v1397
        %v1700 = vpack.c.b16 %v1402, %v1400
        %v1701 = vpack.c.b16 %v1403, %v1401
        %v1702 = vpack.c.b16 %v1406, %v1404
        %v1703 = vpack.c.b16 %v1407, %v1405
        %v1704 = vpack.c.b16 %v1410, %v1408
        %v1705 = vpack.c.b16 %v1411, %v1409
        %v1706 = vpack.c.b16 %v1414, %v1412
        %v1707 = vpack.c.b16 %v1415, %v1413
        %v1708 = vpack.c.b16 %v1418, %v1416
        %v1709 = vpack.c.b16 %v1419, %v1417
        %v1710 = vpack.c.b16 %v1422, %v1420
        %v1711 = vpack.c.b16 %v1423, %v1421
        %v1712 = vpack.c.b16 %v1426, %v1424
        %v1713 = vpack.c.b16 %v1427, %v1425
        %v1714 = vpack.c.b16 %v1430, %v1428
        %v1715 = vpack.c.b16 %v1431, %v1429
        %v1716 = vpack.c.b16 %v1434, %v1432
        %v1717 = vpack.c.b16 %v1435, %v1433
        %v1718 = vpack.c.b16 %v1438, %v1436
        %v1719 = vpack.c.b16 %v1439, %v1437
        %v1720 = vpack.c.b16 %v1442, %v1440
        %v1721 = vpack.c.b16 %v1443, %v1441
        %v1722 = vpack.c.b16 %v1446, %v1444
        %v1723 = vpack.c.b16 %v1447, %v1445
        %v1724 = vpack.c.b16 %v1450, %v1448
        %v1725 = vpack.c.b16 %v1451, %v1449
        %v1726 = vpack.c.b16 %v1454, %v1452
        %v1727 = vpack.c.b16 %v1455, %v1453
        %v1728 = vpack.c.b16 %v1458, %v1456
        %v1729 = vpack.c.b16 %v1459, %v1457
        %v1730 = vpack.c.b16 %v1462, %v1460
        %v1731 = vpack.c.b16 %v1463, %v1461
        %v1732 = vpack.c.b16 %v1466, %v1464
        %v1733 = vpack.c.b16 %v1467, %v1465
        %v1734 = vpack.c.b16 %v1470, %v1468
        %v1735 = vpack.c.b16 %v1471, %v1469
        %v1736 = vpack.c.b16 %v1474, %v1472
        %v1737 = vpack.c.b16 %v1475, %v1473
        %v1738 = vpack.c.b16 %v1478, %v1476
        %v1739 = vpack.c.b16 %v1479, %v1477
        %v1740 = vpack.c.b16 %v1482, %v1480
        %v1741 = vpack.c.b16 %v1483, %v1481
        %v1742 = vpack.c.b16 %v1486, %v1484
        %v1743 = vpack.c.b16 %v1487, %v1485
        %2000 = vmatprep.subr.bf16.mxu0 %v1503
        %2001 = vmatpush1.bf16.msra.mxu0 %v1502
        %2002 = vmatprep.subr.bf16.mxu0 %v1501
        %2003 = vmatpush1.bf16.msra.mxu0 %v1500
        %2004 = vmatprep.subr.bf16.mxu0 %v1499
        %2005 = vmatpush1.bf16.msra.mxu0 %v1498
        %2006 = vmatprep.subr.bf16.mxu0 %v1497
        %2007 = vmatpush1.bf16.msra.mxu0 %v1496
        %2008 = vmatprep.subr.bf16.mxu0 %v1495
        %2009 = vmatpush1.bf16.msra.mxu0 %v1494
        %2010 = vmatprep.subr.bf16.mxu0 %v1493
        %2011 = vmatpush1.bf16.msra.mxu0 %v1492
        %2012 = vmatprep.subr.bf16.mxu0 %v1491
        %2013 = vmatpush1.bf16.msra.mxu0 %v1490
        %2014 = vmatprep.subr.bf16.mxu0 %v1489
        %2015 = vmatpush1.bf16.msra.mxu0 %v1488
        %2016 = vmatprep.subr.bf16.mxu0 %v1519
        %2017 = vmatpush2.bf16.msra.mxu0 %v1518
        %2018 = vmatprep.subr.bf16.mxu0 %v1517
        %2019 = vmatpush2.bf16.msra.mxu0 %v1516
        %2020 = vmatprep.subr.bf16.mxu0 %v1515
        %2021 = vmatpush2.bf16.msra.mxu0 %v1514
        %2022 = vmatprep.subr.bf16.mxu0 %v1513
        %2023 = vmatpush2.bf16.msra.mxu0 %v1512
        %2024 = vmatprep.subr.bf16.mxu0 %v1511
        %2025 = vmatpush2.bf16.msra.mxu0 %v1510
        %2026 = vmatprep.subr.bf16.mxu0 %v1509
        %2027 = vmatpush2.bf16.msra.mxu0 %v1508
        %2028 = vmatprep.subr.bf16.mxu0 %v1507
        %2029 = vmatpush2.bf16.msra.mxu0 %v1506
        %2030 = vmatprep.subr.bf16.mxu0 %v1505
        %2031 = vmatpush2.bf16.msra.mxu0 %v1504
        %2032 = vmatprep.mubr.bf16.mxu0 %v657
        %2033 = vmatmul.mubr.bf16.gmra.mxu0 %v656
        %v2034 = vpop.f32.mrf.mxu0
        %v2035 = vadd.f32 0.0, %v2034
        %v2036 = vpop.f32.mrf.mxu0
        %v2037 = vadd.f32 0.0, %v2036
        %v2038 = vpop.f32.mrf.mxu0
        %v2039 = vadd.f32 0.0, %v2038
        %v2040 = vpop.f32.mrf.mxu0
        %v2041 = vadd.f32 0.0, %v2040
        %2042 = vmatprep.mubr.bf16.mxu0 %v673
        %2043 = vmatmul.mubr.bf16.gmra.mxu0 %v672
        %v2044 = vpop.f32.mrf.mxu0
        %v2045 = vadd.f32 0.0, %v2044
        %v2046 = vpop.f32.mrf.mxu0
        %v2047 = vadd.f32 0.0, %v2046
        %v2048 = vpop.f32.mrf.mxu0
        %v2049 = vpop.f32.mrf.mxu0
        %2050 = vdwg.mxu0
        %2051 = vmatprep.subr.bf16.mxu0 %v1535
        %2052 = vmatpush1.bf16.msra.mxu0 %v1534
        %2053 = vmatprep.subr.bf16.mxu0 %v1533
        %2054 = vmatpush1.bf16.msra.mxu0 %v1532
        %2055 = vmatprep.subr.bf16.mxu0 %v1531
        %2056 = vmatpush1.bf16.msra.mxu0 %v1530
        %2057 = vmatprep.subr.bf16.mxu0 %v1529
        %2058 = vmatpush1.bf16.msra.mxu0 %v1528
        %2059 = vmatprep.subr.bf16.mxu0 %v1527
        %2060 = vmatpush1.bf16.msra.mxu0 %v1526
        %2061 = vmatprep.subr.bf16.mxu0 %v1525
        %2062 = vmatpush1.bf16.msra.mxu0 %v1524
        %2063 = vmatprep.subr.bf16.mxu0 %v1523
        %2064 = vmatpush1.bf16.msra.mxu0 %v1522
        %2065 = vmatprep.subr.bf16.mxu0 %v1521
        %2066 = vmatpush1.bf16.msra.mxu0 %v1520
        %2067 = vmatprep.subr.bf16.mxu0 %v1551
        %2068 = vmatpush2.bf16.msra.mxu0 %v1550
        %2069 = vmatprep.subr.bf16.mxu0 %v1549
        %2070 = vmatpush2.bf16.msra.mxu0 %v1548
        %2071 = vmatprep.subr.bf16.mxu0 %v1547
        %2072 = vmatpush2.bf16.msra.mxu0 %v1546
        %2073 = vmatprep.subr.bf16.mxu0 %v1545
        %2074 = vmatpush2.bf16.msra.mxu0 %v1544
        %2075 = vmatprep.subr.bf16.mxu0 %v1543
        %2076 = vmatpush2.bf16.msra.mxu0 %v1542
        %2077 = vmatprep.subr.bf16.mxu0 %v1541
        %2078 = vmatpush2.bf16.msra.mxu0 %v1540
        %2079 = vmatprep.subr.bf16.mxu0 %v1539
        %2080 = vmatpush2.bf16.msra.mxu0 %v1538
        %2081 = vmatprep.subr.bf16.mxu0 %v1537
        %2082 = vmatpush2.bf16.msra.mxu0 %v1536
        %2083 = vmatprep.mubr.bf16.mxu0 %v659
        %2084 = vmatmul.mubr.bf16.gmra.mxu0 %v658
        %v2085 = vpop.f32.mrf.mxu0
        %v2086 = vadd.f32 %v2035, %v2085
        %v2087 = vpop.f32.mrf.mxu0
        %v2088 = vadd.f32 %v2037, %v2087
        %v2089 = vpop.f32.mrf.mxu0
        %v2090 = vadd.f32 %v2039, %v2089
        %v2091 = vpop.f32.mrf.mxu0
        %v2092 = vadd.f32 %v2041, %v2091
        %2093 = vmatprep.mubr.bf16.mxu0 %v675
        %2094 = vmatmul.mubr.bf16.gmra.mxu0 %v674
        %v2095 = vpop.f32.mrf.mxu0
        %v2096 = vadd.f32 %v2045, %v2095
        %v2097 = vpop.f32.mrf.mxu0
        %v2098 = vadd.f32 %v2047, %v2097
        %v2099 = vpop.f32.mrf.mxu0
        %v2100 = vpop.f32.mrf.mxu0
        %2101 = vdwg.mxu0
        %2102 = vmatprep.subr.bf16.mxu0 %v1567
        %2103 = vmatpush1.bf16.msra.mxu0 %v1566
        %2104 = vmatprep.subr.bf16.mxu0 %v1565
        %2105 = vmatpush1.bf16.msra.mxu0 %v1564
        %2106 = vmatprep.subr.bf16.mxu0 %v1563
        %2107 = vmatpush1.bf16.msra.mxu0 %v1562
        %2108 = vmatprep.subr.bf16.mxu0 %v1561
        %2109 = vmatpush1.bf16.msra.mxu0 %v1560
        %2110 = vmatprep.subr.bf16.mxu0 %v1559
        %2111 = vmatpush1.bf16.msra.mxu0 %v1558
        %2112 = vmatprep.subr.bf16.mxu0 %v1557
        %2113 = vmatpush1.bf16.msra.mxu0 %v1556
        %2114 = vmatprep.subr.bf16.mxu0 %v1555
        %2115 = vmatpush1.bf16.msra.mxu0 %v1554
        %2116 = vmatprep.subr.bf16.mxu0 %v1553
        %2117 = vmatpush1.bf16.msra.mxu0 %v1552
        %2118 = vmatprep.subr.bf16.mxu0 %v1583
        %2119 = vmatpush2.bf16.msra.mxu0 %v1582
        %2120 = vmatprep.subr.bf16.mxu0 %v1581
        %2121 = vmatpush2.bf16.msra.mxu0 %v1580
        %2122 = vmatprep.subr.bf16.mxu0 %v1579
        %2123 = vmatpush2.bf16.msra.mxu0 %v1578
        %2124 = vmatprep.subr.bf16.mxu0 %v1577
        %2125 = vmatpush2.bf16.msra.mxu0 %v1576
        %2126 = vmatprep.subr.bf16.mxu0 %v1575
        %2127 = vmatpush2.bf16.msra.mxu0 %v1574
        %2128 = vmatprep.subr.bf16.mxu0 %v1573
        %2129 = vmatpush2.bf16.msra.mxu0 %v1572
        %2130 = vmatprep.subr.bf16.mxu0 %v1571
        %2131 = vmatpush2.bf16.msra.mxu0 %v1570
        %2132 = vmatprep.subr.bf16.mxu0 %v1569
        %2133 = vmatpush2.bf16.msra.mxu0 %v1568
        %2134 = vmatprep.mubr.bf16.mxu0 %v661
        %2135 = vmatmul.mubr.bf16.gmra.mxu0 %v660
        %v2136 = vpop.f32.mrf.mxu0
        %v2137 = vadd.f32 %v2086, %v2136
        %v2138 = vpop.f32.mrf.mxu0
        %v2139 = vadd.f32 %v2088, %v2138
        %v2140 = vpop.f32.mrf.mxu0
        %v2141 = vadd.f32 %v2090, %v2140
        %v2142 = vpop.f32.mrf.mxu0
        %v2143 = vadd.f32 %v2092, %v2142
        %2144 = vmatprep.mubr.bf16.mxu0 %v677
        %2145 = vmatmul.mubr.bf16.gmra.mxu0 %v676
        %v2146 = vpop.f32.mrf.mxu0
        %v2147 = vadd.f32 %v2096, %v2146
        %v2148 = vpop.f32.mrf.mxu0
        %v2149 = vadd.f32 %v2098, %v2148
        %v2150 = vpop.f32.mrf.mxu0
        %v2151 = vpop.f32.mrf.mxu0
        %2152 = vdwg.mxu0
        %2153 = vmatprep.subr.bf16.mxu0 %v1599
        %2154 = vmatpush1.bf16.msra.mxu0 %v1598
        %2155 = vmatprep.subr.bf16.mxu0 %v1597
        %2156 = vmatpush1.bf16.msra.mxu0 %v1596
        %2157 = vmatprep.subr.bf16.mxu0 %v1595
        %2158 = vmatpush1.bf16.msra.mxu0 %v1594
        %2159 = vmatprep.subr.bf16.mxu0 %v1593
        %2160 = vmatpush1.bf16.msra.mxu0 %v1592
        %2161 = vmatprep.subr.bf16.mxu0 %v1591
        %2162 = vmatpush1.bf16.msra.mxu0 %v1590
        %2163 = vmatprep.subr.bf16.mxu0 %v1589
        %2164 = vmatpush1.bf16.msra.mxu0 %v1588
        %2165 = vmatprep.subr.bf16.mxu0 %v1587
        %2166 = vmatpush1.bf16.msra.mxu0 %v1586
        %2167 = vmatprep.subr.bf16.mxu0 %v1585
        %2168 = vmatpush1.bf16.msra.mxu0 %v1584
        %2169 = vmatprep.subr.bf16.mxu0 %v1615
        %2170 = vmatpush2.bf16.msra.mxu0 %v1614
        %2171 = vmatprep.subr.bf16.mxu0 %v1613
        %2172 = vmatpush2.bf16.msra.mxu0 %v1612
        %2173 = vmatprep.subr.bf16.mxu0 %v1611
        %2174 = vmatpush2.bf16.msra.mxu0 %v1610
        %2175 = vmatprep.subr.bf16.mxu0 %v1609
        %2176 = vmatpush2.bf16.msra.mxu0 %v1608
        %2177 = vmatprep.subr.bf16.mxu0 %v1607
        %2178 = vmatpush2.bf16.msra.mxu0 %v1606
        %2179 = vmatprep.subr.bf16.mxu0 %v1605
        %2180 = vmatpush2.bf16.msra.mxu0 %v1604
        %2181 = vmatprep.subr.bf16.mxu0 %v1603
        %2182 = vmatpush2.bf16.msra.mxu0 %v1602
        %2183 = vmatprep.subr.bf16.mxu0 %v1601
        %2184 = vmatpush2.bf16.msra.mxu0 %v1600
        %2185 = vmatprep.mubr.bf16.mxu0 %v663
        %2186 = vmatmul.mubr.bf16.gmra.mxu0 %v662
        %v2187 = vpop.f32.mrf.mxu0
        %v2188 = vadd.f32 %v2137, %v2187
        %v2189 = vpop.f32.mrf.mxu0
        %v2190 = vadd.f32 %v2139, %v2189
        %v2191 = vpop.f32.mrf.mxu0
        %v2192 = vadd.f32 %v2141, %v2191
        %v2193 = vpop.f32.mrf.mxu0
        %v2194 = vadd.f32 %v2143, %v2193
        %2195 = vmatprep.mubr.bf16.mxu0 %v679
        %2196 = vmatmul.mubr.bf16.gmra.mxu0 %v678
        %v2197 = vpop.f32.mrf.mxu0
        %v2198 = vadd.f32 %v2147, %v2197
        %v2199 = vpop.f32.mrf.mxu0
        %v2200 = vadd.f32 %v2149, %v2199
        %v2201 = vpop.f32.mrf.mxu0
        %v2202 = vpop.f32.mrf.mxu0
        %2203 = vdwg.mxu0
        %2204 = vmatprep.subr.bf16.mxu0 %v1631
        %2205 = vmatpush1.bf16.msra.mxu0 %v1630
        %2206 = vmatprep.subr.bf16.mxu0 %v1629
        %2207 = vmatpush1.bf16.msra.mxu0 %v1628
        %2208 = vmatprep.subr.bf16.mxu0 %v1627
        %2209 = vmatpush1.bf16.msra.mxu0 %v1626
        %2210 = vmatprep.subr.bf16.mxu0 %v1625
        %2211 = vmatpush1.bf16.msra.mxu0 %v1624
        %2212 = vmatprep.subr.bf16.mxu0 %v1623
        %2213 = vmatpush1.bf16.msra.mxu0 %v1622
        %2214 = vmatprep.subr.bf16.mxu0 %v1621
        %2215 = vmatpush1.bf16.msra.mxu0 %v1620
        %2216 = vmatprep.subr.bf16.mxu0 %v1619
        %2217 = vmatpush1.bf16.msra.mxu0 %v1618
        %2218 = vmatprep.subr.bf16.mxu0 %v1617
        %2219 = vmatpush1.bf16.msra.mxu0 %v1616
        %2220 = vmatprep.subr.bf16.mxu0 %v1647
        %2221 = vmatpush2.bf16.msra.mxu0 %v1646
        %2222 = vmatprep.subr.bf16.mxu0 %v1645
        %2223 = vmatpush2.bf16.msra.mxu0 %v1644
        %2224 = vmatprep.subr.bf16.mxu0 %v1643
        %2225 = vmatpush2.bf16.msra.mxu0 %v1642
        %2226 = vmatprep.subr.bf16.mxu0 %v1641
        %2227 = vmatpush2.bf16.msra.mxu0 %v1640
        %2228 = vmatprep.subr.bf16.mxu0 %v1639
        %2229 = vmatpush2.bf16.msra.mxu0 %v1638
        %2230 = vmatprep.subr.bf16.mxu0 %v1637
        %2231 = vmatpush2.bf16.msra.mxu0 %v1636
        %2232 = vmatprep.subr.bf16.mxu0 %v1635
        %2233 = vmatpush2.bf16.msra.mxu0 %v1634
        %2234 = vmatprep.subr.bf16.mxu0 %v1633
        %2235 = vmatpush2.bf16.msra.mxu0 %v1632
        %2236 = vmatprep.mubr.bf16.mxu0 %v665
        %2237 = vmatmul.mubr.bf16.gmra.mxu0 %v664
        %v2238 = vpop.f32.mrf.mxu0
        %v2239 = vadd.f32 %v2188, %v2238
        %v2240 = vpop.f32.mrf.mxu0
        %v2241 = vadd.f32 %v2190, %v2240
        %v2242 = vpop.f32.mrf.mxu0
        %v2243 = vadd.f32 %v2192, %v2242
        %v2244 = vpop.f32.mrf.mxu0
        %v2245 = vadd.f32 %v2194, %v2244
        %2246 = vmatprep.mubr.bf16.mxu0 %v681
        %2247 = vmatmul.mubr.bf16.gmra.mxu0 %v680
        %v2248 = vpop.f32.mrf.mxu0
        %v2249 = vadd.f32 %v2198, %v2248
        %v2250 = vpop.f32.mrf.mxu0
        %v2251 = vadd.f32 %v2200, %v2250
        %v2252 = vpop.f32.mrf.mxu0
        %v2253 = vpop.f32.mrf.mxu0
        %2254 = vdwg.mxu0
        %2255 = vmatprep.subr.bf16.mxu0 %v1663
        %2256 = vmatpush1.bf16.msra.mxu0 %v1662
        %2257 = vmatprep.subr.bf16.mxu0 %v1661
        %2258 = vmatpush1.bf16.msra.mxu0 %v1660
        %2259 = vmatprep.subr.bf16.mxu0 %v1659
        %2260 = vmatpush1.bf16.msra.mxu0 %v1658
        %2261 = vmatprep.subr.bf16.mxu0 %v1657
        %2262 = vmatpush1.bf16.msra.mxu0 %v1656
        %2263 = vmatprep.subr.bf16.mxu0 %v1655
        %2264 = vmatpush1.bf16.msra.mxu0 %v1654
        %2265 = vmatprep.subr.bf16.mxu0 %v1653
        %2266 = vmatpush1.bf16.msra.mxu0 %v1652
        %2267 = vmatprep.subr.bf16.mxu0 %v1651
        %2268 = vmatpush1.bf16.msra.mxu0 %v1650
        %2269 = vmatprep.subr.bf16.mxu0 %v1649
        %2270 = vmatpush1.bf16.msra.mxu0 %v1648
        %2271 = vmatprep.subr.bf16.mxu0 %v1679
        %2272 = vmatpush2.bf16.msra.mxu0 %v1678
        %2273 = vmatprep.subr.bf16.mxu0 %v1677
        %2274 = vmatpush2.bf16.msra.mxu0 %v1676
        %2275 = vmatprep.subr.bf16.mxu0 %v1675
        %2276 = vmatpush2.bf16.msra.mxu0 %v1674
        %2277 = vmatprep.subr.bf16.mxu0 %v1673
        %2278 = vmatpush2.bf16.msra.mxu0 %v1672
        %2279 = vmatprep.subr.bf16.mxu0 %v1671
        %2280 = vmatpush2.bf16.msra.mxu0 %v1670
        %2281 = vmatprep.subr.bf16.mxu0 %v1669
        %2282 = vmatpush2.bf16.msra.mxu0 %v1668
        %2283 = vmatprep.subr.bf16.mxu0 %v1667
        %2284 = vmatpush2.bf16.msra.mxu0 %v1666
        %2285 = vmatprep.subr.bf16.mxu0 %v1665
        %2286 = vmatpush2.bf16.msra.mxu0 %v1664
        %2287 = vmatprep.mubr.bf16.mxu0 %v667
        %2288 = vmatmul.mubr.bf16.gmra.mxu0 %v666
        %v2289 = vpop.f32.mrf.mxu0
        %v2290 = vadd.f32 %v2239, %v2289
        %v2291 = vpop.f32.mrf.mxu0
        %v2292 = vadd.f32 %v2241, %v2291
        %v2293 = vpop.f32.mrf.mxu0
        %v2294 = vadd.f32 %v2243, %v2293
        %v2295 = vpop.f32.mrf.mxu0
        %v2296 = vadd.f32 %v2245, %v2295
        %2297 = vmatprep.mubr.bf16.mxu0 %v683
        %2298 = vmatmul.mubr.bf16.gmra.mxu0 %v682
        %v2299 = vpop.f32.mrf.mxu0
        %v2300 = vadd.f32 %v2249, %v2299
        %v2301 = vpop.f32.mrf.mxu0
        %v2302 = vadd.f32 %v2251, %v2301
        %v2303 = vpop.f32.mrf.mxu0
        %v2304 = vpop.f32.mrf.mxu0
        %2305 = vdwg.mxu0
        %2306 = vmatprep.subr.bf16.mxu0 %v1695
        %2307 = vmatpush1.bf16.msra.mxu0 %v1694
        %2308 = vmatprep.subr.bf16.mxu0 %v1693
        %2309 = vmatpush1.bf16.msra.mxu0 %v1692
        %2310 = vmatprep.subr.bf16.mxu0 %v1691
        %2311 = vmatpush1.bf16.msra.mxu0 %v1690
        %2312 = vmatprep.subr.bf16.mxu0 %v1689
        %2313 = vmatpush1.bf16.msra.mxu0 %v1688
        %2314 = vmatprep.subr.bf16.mxu0 %v1687
        %2315 = vmatpush1.bf16.msra.mxu0 %v1686
        %2316 = vmatprep.subr.bf16.mxu0 %v1685
        %2317 = vmatpush1.bf16.msra.mxu0 %v1684
        %2318 = vmatprep.subr.bf16.mxu0 %v1683
        %2319 = vmatpush1.bf16.msra.mxu0 %v1682
        %2320 = vmatprep.subr.bf16.mxu0 %v1681
        %2321 = vmatpush1.bf16.msra.mxu0 %v1680
        %2322 = vmatprep.subr.bf16.mxu0 %v1711
        %2323 = vmatpush2.bf16.msra.mxu0 %v1710
        %2324 = vmatprep.subr.bf16.mxu0 %v1709
        %2325 = vmatpush2.bf16.msra.mxu0 %v1708
        %2326 = vmatprep.subr.bf16.mxu0 %v1707
        %2327 = vmatpush2.bf16.msra.mxu0 %v1706
        %2328 = vmatprep.subr.bf16.mxu0 %v1705
        %2329 = vmatpush2.bf16.msra.mxu0 %v1704
        %2330 = vmatprep.subr.bf16.mxu0 %v1703
        %2331 = vmatpush2.bf16.msra.mxu0 %v1702
        %2332 = vmatprep.subr.bf16.mxu0 %v1701
        %2333 = vmatpush2.bf16.msra.mxu0 %v1700
        %2334 = vmatprep.subr.bf16.mxu0 %v1699
        %2335 = vmatpush2.bf16.msra.mxu0 %v1698
        %2336 = vmatprep.subr.bf16.mxu0 %v1697
        %2337 = vmatpush2.bf16.msra.mxu0 %v1696
        %2338 = vmatprep.mubr.bf16.mxu0 %v669
        %2339 = vmatmul.mubr.bf16.gmra.mxu0 %v668
        %v2340 = vpop.f32.mrf.mxu0
        %v2341 = vadd.f32 %v2290, %v2340
        %v2342 = vpop.f32.mrf.mxu0
        %v2343 = vadd.f32 %v2292, %v2342
        %v2344 = vpop.f32.mrf.mxu0
        %v2345 = vadd.f32 %v2294, %v2344
        %v2346 = vpop.f32.mrf.mxu0
        %v2347 = vadd.f32 %v2296, %v2346
        %2348 = vmatprep.mubr.bf16.mxu0 %v685
        %2349 = vmatmul.mubr.bf16.gmra.mxu0 %v684
        %v2350 = vpop.f32.mrf.mxu0
        %v2351 = vadd.f32 %v2300, %v2350
        %v2352 = vpop.f32.mrf.mxu0
        %v2353 = vadd.f32 %v2302, %v2352
        %v2354 = vpop.f32.mrf.mxu0
        %v2355 = vpop.f32.mrf.mxu0
        %2356 = vdwg.mxu0
        %2357 = vmatprep.subr.bf16.mxu0 %v1727
        %2358 = vmatpush1.bf16.msra.mxu0 %v1726
        %2359 = vmatprep.subr.bf16.mxu0 %v1725
        %2360 = vmatpush1.bf16.msra.mxu0 %v1724
        %2361 = vmatprep.subr.bf16.mxu0 %v1723
        %2362 = vmatpush1.bf16.msra.mxu0 %v1722
        %2363 = vmatprep.subr.bf16.mxu0 %v1721
        %2364 = vmatpush1.bf16.msra.mxu0 %v1720
        %2365 = vmatprep.subr.bf16.mxu0 %v1719
        %2366 = vmatpush1.bf16.msra.mxu0 %v1718
        %2367 = vmatprep.subr.bf16.mxu0 %v1717
        %2368 = vmatpush1.bf16.msra.mxu0 %v1716
        %2369 = vmatprep.subr.bf16.mxu0 %v1715
        %2370 = vmatpush1.bf16.msra.mxu0 %v1714
        %2371 = vmatprep.subr.bf16.mxu0 %v1713
        %2372 = vmatpush1.bf16.msra.mxu0 %v1712
        %2373 = vmatprep.subr.bf16.mxu0 %v1743
        %2374 = vmatpush2.bf16.msra.mxu0 %v1742
        %2375 = vmatprep.subr.bf16.mxu0 %v1741
        %2376 = vmatpush2.bf16.msra.mxu0 %v1740
        %2377 = vmatprep.subr.bf16.mxu0 %v1739
        %2378 = vmatpush2.bf16.msra.mxu0 %v1738
        %2379 = vmatprep.subr.bf16.mxu0 %v1737
        %2380 = vmatpush2.bf16.msra.mxu0 %v1736
        %2381 = vmatprep.subr.bf16.mxu0 %v1735
        %2382 = vmatpush2.bf16.msra.mxu0 %v1734
        %2383 = vmatprep.subr.bf16.mxu0 %v1733
        %2384 = vmatpush2.bf16.msra.mxu0 %v1732
        %2385 = vmatprep.subr.bf16.mxu0 %v1731
        %2386 = vmatpush2.bf16.msra.mxu0 %v1730
        %2387 = vmatprep.subr.bf16.mxu0 %v1729
        %2388 = vmatpush2.bf16.msra.mxu0 %v1728
        %2389 = vmatprep.mubr.bf16.mxu0 %v671
        %2390 = vmatmul.mubr.bf16.gmra.mxu0 %v670
        %v2391 = vpop.f32.mrf.mxu0
        %v2392 = vadd.f32 %v2341, %v2391
        %v2393 = vpop.f32.mrf.mxu0
        %v2394 = vadd.f32 %v2343, %v2393
        %v2395 = vpop.f32.mrf.mxu0
        %v2396 = vadd.f32 %v2345, %v2395
        %v2397 = vpop.f32.mrf.mxu0
        %v2398 = vadd.f32 %v2347, %v2397
        %2399 = vmatprep.mubr.bf16.mxu0 %v687
        %2400 = vmatmul.mubr.bf16.gmra.mxu0 %v686
        %v2401 = vpop.f32.mrf.mxu0
        %v2402 = vadd.f32 %v2351, %v2401
        %v2403 = vpop.f32.mrf.mxu0
        %v2404 = vadd.f32 %v2353, %v2403
        %v2405 = vpop.f32.mrf.mxu0
        %v2406 = vpop.f32.mrf.mxu0
        %2407 = vdwg.mxu0
        %v2408 = vmul.f32 %v2392, %v2392
        %v2409 = vmul.f32 %v2396, %v2396
        %v2410 = vmul.f32 %v2402, %v2402
        %v2411 = vmul.f32 %v2394, %v2394
        %v2412 = vmul.f32 %v2398, %v2398
        %v2413 = vmul.f32 %v2404, %v2404
        %v2414 = vadd.f32 %v2408, %v2411
        %v2415 = vadd.f32 %v2409, %v2412
        %v2416 = vadd.f32 %v2410, %v2413
        %v2417 = vld [vmem:[%s285] sm:$0xff]
        %v2418 = vld [vmem:[%s285 + $0x8] sm:$0xff]
        %v2419 = vld [vmem:[%s285 + $0x10] sm:$0xff]
        %v2420 = vadd.f32 %v2417, %v2414
        %v2421 = vadd.f32 %v2418, %v2415
        %v2422 = vadd.f32 %v2419, %v2416
        %2423 = vst [vmem:[%s285] sm:$0xff] %v2420
        %2424 = vst [vmem:[%s285 + $0x8] sm:$0xff] %v2421
        %2425 = vst [vmem:[%s285 + $0x10] sm:$0xff] %v2422
        %v2426 = vld [vmem:[%s291] sm:$0xff]
        %v2427 = vld [vmem:[%s291 + $0x8] sm:$0xff]
        %v2428 = vld [vmem:[%s291 + $0x10] sm:$0xff]
        %v2429 = vpack.c.bf16 %v2415, %v2414
        %v2430 = vpack.c.bf16 %v2416, %v2416
        %v2431 = vld [vmem:[%s279] sm:$0xf]
        %v2432 = vld [vmem:[%s279 + $0x4] sm:$0xf]
        %v2433 = vld [vmem:[%s279 + $0x8] sm:$0xf]
        %v2434 = vld [vmem:[%s279 + $0xc] sm:$0xf]
        %v2435 = vld [vmem:[%s279 + $0x10] sm:$0xf]
        %v2436 = vld [vmem:[%s279 + $0x14] sm:$0xf]
        %v2437 = vld [vmem:[%s279 + $0x18] sm:$0xf]
        %v2438 = vld [vmem:[%s279 + $0x1c] sm:$0xf]
        %v2439 = vld [vmem:[%s279 + $0x20] sm:$0xf]
        %v2440 = vld [vmem:[%s279 + $0x24] sm:$0xf]
        %v2441 = vld [vmem:[%s279 + $0x28] sm:$0xf]
        %v2442 = vld [vmem:[%s279 + $0x2c] sm:$0xf]
        %v2443 = vld [vmem:[%s279 + $0x30] sm:$0xf]
        %v2444 = vld [vmem:[%s279 + $0x34] sm:$0xf]
        %v2445 = vld [vmem:[%s279 + $0x38] sm:$0xf]
        %v2446 = vld [vmem:[%s279 + $0x3c] sm:$0xf]
        %v2463 = vunpack.c.l.b16 %v2431
        %v2464 = vunpack.c.l.b16 %v2432
        %v2465 = vunpack.c.l.b16 %v2433
        %v2466 = vunpack.c.l.b16 %v2434
        %v2467 = vunpack.c.l.b16 %v2435
        %v2468 = vunpack.c.l.b16 %v2436
        %v2469 = vunpack.c.l.b16 %v2437
        %v2470 = vunpack.c.l.b16 %v2438
        %v2471 = vunpack.c.l.b16 %v2439
        %v2472 = vunpack.c.l.b16 %v2440
        %v2473 = vunpack.c.l.b16 %v2441
        %v2474 = vunpack.c.l.b16 %v2442
        %v2475 = vunpack.c.l.b16 %v2443
        %v2476 = vunpack.c.l.b16 %v2444
        %v2477 = vunpack.c.l.b16 %v2445
        %v2478 = vunpack.c.l.b16 %v2446
        %v2479 = vpack.c.b16 %v2464, %v2463
        %v2480 = vpack.c.b16 %v2466, %v2465
        %v2481 = vpack.c.b16 %v2468, %v2467
        %v2482 = vpack.c.b16 %v2470, %v2469
        %v2483 = vpack.c.b16 %v2472, %v2471
        %v2484 = vpack.c.b16 %v2474, %v2473
        %v2485 = vpack.c.b16 %v2476, %v2475
        %v2486 = vpack.c.b16 %v2478, %v2477
        %2495 = vmatprep.subr.bf16.mxu0 0
        %2496 = vmatpush1.bf16.msra.mxu0 %v2486
        %2497 = vmatprep.subr.bf16.mxu0 0
        %2498 = vmatpush1.bf16.msra.mxu0 %v2485
        %2499 = vmatprep.subr.bf16.mxu0 0
        %2500 = vmatpush1.bf16.msra.mxu0 %v2484
        %2501 = vmatprep.subr.bf16.mxu0 0
        %2502 = vmatpush1.bf16.msra.mxu0 %v2483
        %2503 = vmatprep.subr.bf16.mxu0 0
        %2504 = vmatpush1.bf16.msra.mxu0 %v2482
        %2505 = vmatprep.subr.bf16.mxu0 0
        %2506 = vmatpush1.bf16.msra.mxu0 %v2481
        %2507 = vmatprep.subr.bf16.mxu0 0
        %2508 = vmatpush1.bf16.msra.mxu0 %v2480
        %2509 = vmatprep.subr.bf16.mxu0 0
        %2510 = vmatpush1.bf16.msra.mxu0 %v2479
        %2511 = vmatprep.subr.bf16.mxu0 0
        %2512 = vmatpush2.bf16.msra.mxu0 0
        %2513 = vmatprep.subr.bf16.mxu0 0
        %2514 = vmatpush2.bf16.msra.mxu0 0
        %2515 = vmatprep.subr.bf16.mxu0 0
        %2516 = vmatpush2.bf16.msra.mxu0 0
        %2517 = vmatprep.subr.bf16.mxu0 0
        %2518 = vmatpush2.bf16.msra.mxu0 0
        %2519 = vmatprep.subr.bf16.mxu0 0
        %2520 = vmatpush2.bf16.msra.mxu0 0
        %2521 = vmatprep.subr.bf16.mxu0 0
        %2522 = vmatpush2.bf16.msra.mxu0 0
        %2523 = vmatprep.subr.bf16.mxu0 0
        %2524 = vmatpush2.bf16.msra.mxu0 0
        %2525 = vmatprep.subr.bf16.mxu0 0
        %2526 = vmatpush2.bf16.msra.mxu0 0
        %2527 = vmatprep.mubr.bf16.mxu0 0
        %2528 = vmatmul.mubr.bf16.gmra.mxu0 %v2429
        %v2529 = vpop.f32.mrf.mxu0
        %v2530 = vadd.f32 0.0, %v2529
        %v2531 = vpop.f32.mrf.mxu0
        %v2532 = vpop.f32.mrf.mxu0
        %v2533 = vadd.f32 0.0, %v2532
        %v2534 = vpop.f32.mrf.mxu0
        %2535 = vmatprep.mubr.bf16.mxu0 0
        %2536 = vmatmul.mubr.bf16.gmra.mxu0 %v2430
        %v2537 = vpop.f32.mrf.mxu0
        %v2538 = vadd.f32 0.0, %v2537
        %v2539 = vpop.f32.mrf.mxu0
        %v2540 = vpop.f32.mrf.mxu0
        %v2541 = vpop.f32.mrf.mxu0
        %2542 = vdwg.mxu0
        %v2543 = vadd.f32 %v2426, %v2530
        %v2544 = vadd.f32 %v2427, %v2533
        %v2545 = vadd.f32 %v2428, %v2538
        %2546 = vst [vmem:[%s291] sm:$0xff] %v2543
        %2547 = vst [vmem:[%s291 + $0x8] sm:$0xff] %v2544
        %2548 = vst [vmem:[%s291 + $0x10] sm:$0xff] %v2545
        %s2549 = smul.u32 3, %s23
        %p2550 = scmp.lt.s32.totalorder %s2549, 2
        %s2551 = scalar_select %p2550, %s2549, 2
        %s2552 = smul.addr %s2551, 8
        %s2553 = scalar_lea.vmem %s3, %s2552
        %s2554 = smul.u32 3, %s23
        %p2555 = scmp.lt.s32.totalorder %s2554, 2
        %s2556 = scalar_select %p2555, %s2554, 2
        %s2557 = smul.addr %s2556, 8
        %s2558 = scalar_lea.vmem %s4, %s2557
        // Predicated region
        $region41: #{pesto_forward.1} parent=31 // pred_check
          %p2559 = pneg %p127
        $region42: #{pesto_forward.1} parent=31 // pred_check_branch
          %2561 = sbr.rel (%p2559) target = $region44
        $region43: #{pesto_forward.1} parent=31 // pred_region
          %s2562 = smul.u32 3, %s23
        $region44: #{pesto_forward.1} parent=31 // pred_fallthru
          _
        // Predicated region
        $region45: #{pesto_forward.1} parent=31 // pred_check
          %p2563 = pneg %p153
        $region46: #{pesto_forward.1} parent=31 // pred_check_branch
          %2565 = sbr.rel (%p2563) target = $region48
        $region47: #{pesto_forward.1} parent=31 // pred_region
          %s2566 = smul.u32 3, %s23
        $region48: #{pesto_forward.1} parent=31 // pred_fallthru
          _
        // Predicated region
        $region49: #{pesto_forward.1} parent=31 // pred_check
          %p2567 = pneg %p127
        $region50: #{pesto_forward.1} parent=31 // pred_check_branch
          %2569 = sbr.rel (%p2567) target = $region52
        $region51: #{pesto_forward.1} parent=31 // pred_region
          %s2570 = smul.u32 3, %s23
          %p2571 = scmp.lt.s32.totalorder %s2570, 2
          %s2572 = scalar_select %p2571, %s2570, 2
          %s2573 = smul.addr %s2572, 8
          %s2574 = scalar_lea.vmem %s3, %s2573
        $region52: #{pesto_forward.1} parent=31 // pred_fallthru
          _
        // Predicated region
        $region53: #{pesto_forward.1} parent=31 // pred_check
          %p2575 = pneg %p153
        $region54: #{pesto_forward.1} parent=31 // pred_check_branch
          %2577 = sbr.rel (%p2575) target = $region56
        $region55: #{pesto_forward.1} parent=31 // pred_region
          %s2578 = smul.u32 3, %s23
          %p2579 = scmp.lt.s32.totalorder %s2578, 2
          %s2580 = scalar_select %p2579, %s2578, 2
          %s2581 = smul.addr %s2580, 8
          %s2582 = scalar_lea.vmem %s4, %s2581
        $region56: #{pesto_forward.1} parent=31 // pred_fallthru
          _
      $region32: #{pesto_forward.1} parent=5 // pred_fallthru
        _
      %p2583 = scmp.le.s32.totalorder 2, %s14
      // Predicated region
      $region57: #{pesto_forward.1} parent=5 // pred_check
        %p2584 = pneg %p2583
      $region58: #{pesto_forward.1} parent=5 // pred_check_branch
        %2586 = sbr.rel (%p2584) target = $region60
      $region59: #{pesto_forward.1} parent=5 // pred_region
        %s2587 = ssub.s32 %s14, 2
      $region60: #{pesto_forward.1} parent=5 // pred_fallthru
        _
    $region6: #{pesto_forward.1} parent=1 // loop_footer
      %s18 = sadd.s32 1, %s14
    $region7: #{pesto_forward.1} parent=1 // loop_footer_branch
      %13 = sbr.rel target = $region3
    $region8: #{pesto_forward.1} parent=1 // loop_exit
      _
    %2588 = vsyncpa [#allocation3], 1
    %s2589 = scalar_lea.sflag [#allocation3], 1
    %2590 = vsyncpa %s2589, 1

</llo_original>
